<compile_context>
chip_gen: v7x
topology: tpu7x:2x2x1
jax: 0.10.0
libtpu: 0.0.40
codegen_flags: <defaults>
</compile_context>

<pallas_src>
import functools

import numpy as np
import jax
import jax.numpy as jnp
from jax.experimental import pallas as pl
from jax.experimental.pallas import tpu as pltpu

_LANE = 128
_L_IN = 112          # input length implied by fc1 = Linear(64*3, 128)
_ROW_TILE = 256      # MXU-filling row tile for large batches (mult. of 128 & 256)

# Per conv layer: (Cin, Cout, K, stride, pad, Lin, Lout)
_CONV_CFG = (
    (1, 16, 8, 2, 3, 112, 56),   # conv1 -> pool -> 28 positions
    (16, 32, 8, 2, 3, 28, 14),   # conv2 -> pool -> 7 positions
    (32, 64, 4, 1, 1, 7, 6),     # conv3 -> pool -> 3 positions
)
# Lane-aligned "half" width per layer (>= Lpool*Cout, multiple of 128).
_HALF = (512, 256, 256)
# Lane-aligned input row width per layer (layer0 = raw signal, then prev half).
_IN_W = (128, 512, 256)


# ---------------------------------------------------------------------------
# One-time parameter re-layout (off the hot path)
# ---------------------------------------------------------------------------
def _conv_toeplitz(w, b, cfg, in_width, half):
    """Fold Conv1d(weight, padding) + the even/odd split used by MaxPool(2,2)
    into a single (in_width, 2*half) matrix and a (1, 2*half) bias row.

    Activation column layout (both input and pooled output): col = pos*C + ch.
    Output columns: [blk*Cout + co]        -> conv position 2*blk   (even)
                    [half + blk*Cout + co] -> conv position 2*blk+1 (odd)
    so MaxPool1d(2,2) becomes max(first_half, second_half) in-kernel.
    """
    cin_n, cout_n, K, stride, pad, lin, lout = cfg
    w = np.asarray(w, np.float32)          # (Cout, Cin, K), PyTorch layout
    b = np.asarray(b, np.float32)
    W = np.zeros((in_width, 2 * half), np.float32)
    Brow = np.zeros((1, 2 * half), np.float32)
    for t in range(lout):                  # lout is even; pool uses all positions
        col0 = (t % 2) * half + (t // 2) * cout_n
        Brow[0, col0:col0 + cout_n] = b
        for k in range(K):
            m = stride * t + k - pad       # input position (out-of-range = zero pad)
            if 0 <= m < lin:
                W[m * cin_n:(m + 1) * cin_n, col0:col0 + cout_n] = w[:, :, k].T
    return W, Brow


def prepare_params(params, compute_dtype=jnp.bfloat16):
    """PyTorch-layout params -> kernel-ready matrices (done once)."""
    num_classes = int(params["fc2_w"].shape[0])
    assert num_classes <= _LANE
    prepared = {"num_classes": num_classes}

    for i, (wk, bk) in enumerate((("w1", "b1"), ("w2", "b2"), ("w3", "b3"))):
        W, Brow = _conv_toeplitz(params[wk], params[bk], _CONV_CFG[i],
                                 _IN_W[i], _HALF[i])
        prepared[f"cw{i}"] = jnp.asarray(W, compute_dtype)
        prepared[f"cb{i}"] = jnp.asarray(Brow, jnp.float32)

    # fc1: PyTorch flattens (B, 64, 3) as index c*3 + p; our z3 column is p*64 + c,
    # so permute fc1's columns once here instead of transposing activations per call.
    fc1_w = np.asarray(params["fc1_w"], np.float32)                    # (128, 192)
    Wf1 = np.zeros((_HALF[2], 128), np.float32)
    Wf1[:192, :] = fc1_w.reshape(128, 64, 3).transpose(2, 1, 0).reshape(192, 128)
    bf1 = np.asarray(params["fc1_b"], np.float32).reshape(1, 128)
    prepared["fw1"] = jnp.asarray(Wf1, compute_dtype)
    prepared["fb1"] = jnp.asarray(bf1, jnp.float32)

    # fc2: pad logits to a full 128-lane output (lane-dense store).
    # There is no activation between fc1 and fc2, so fold them once here:
    #   logits = z3 @ (Wf1 @ Wf2) + (bf1 @ Wf2 + bf2)
    # which makes the two final matmuls (x128 and logits) independent.
    fc2_w = np.asarray(params["fc2_w"], np.float32)                    # (nc, 128)
    Wf2 = np.zeros((128, _LANE), np.float32)
    Wf2[:, :num_classes] = fc2_w.T
    bf2 = np.zeros((1, _LANE), np.float32)
    bf2[0, :num_classes] = np.asarray(params["fc2_b"], np.float32)
    W12 = Wf1 @ Wf2                                                    # (256, 128)
    b12 = bf1 @ Wf2 + bf2                                              # (1, 128)
    prepared["w12"] = jnp.asarray(W12, compute_dtype)
    prepared["b12"] = jnp.asarray(b12, jnp.float32)
    return prepared


# ---------------------------------------------------------------------------
# Fused kernel: whole forward for one (TR, 128) row tile, weights VMEM-resident
# ---------------------------------------------------------------------------
def _cnn1d_fused_kernel(x_ref, w1, b1, w2, b2, w3, b3, wf1, bf1, w12, b12,
                        x128_ref, logits_ref):
    dt = w1.dtype  # bf16 compute dtype, f32 accumulation

    def conv_block(a, w_ref, b_ref):
        # conv (Toeplitz matmul) + bias + ReLU + MaxPool1d(2,2) (= max of halves).
        # Epilogue in f32 (v5e-safe); cast pooled result to bf16 for the next MXU.
        y = jnp.dot(a, w_ref[...], preferred_element_type=jnp.float32)
        r = jnp.maximum(y + b_ref[...], 0.0)
        h = r.shape[-1] // 2
        return jnp.maximum(r[:, :h], r[:, h:]).astype(dt)

    z = x_ref[...].astype(dt)           # (TR, 128): raw signal in lanes 0..111
    z = conv_block(z, w1, b1)           # (TR, 512): 28 positions x 16 ch (+pad)
    z = conv_block(z, w2, b2)           # (TR, 256):  7 positions x 32 ch (+pad)
    z = conv_block(z, w3, b3)           # (TR, 256):  3 positions x 64 ch (+pad)

    # fc1 (no activation, as in the PyTorch forward) and folded fc1*fc2:
    # two independent MXU matmuls (no serial push->pop->push chain).
    x128_ref[...] = (jnp.dot(z, wf1[...], preferred_element_type=jnp.float32)
                     + bf1[...])
    logits_ref[...] = (jnp.dot(z, w12[...], preferred_element_type=jnp.float32)
                       + b12[...])


def cnn1d_forward(prepared, x_ncl):
    """x_ncl: (B, 1, 112) float32 (PyTorch NCL). Returns (x_128, output)."""
    B = x_ncl.shape[0]
    num_classes = prepared["num_classes"]

    # Row tiling: small batches -> one step padded to a multiple of 8;
    # large batches -> MXU-filling tiles of _ROW_TILE rows, weights resident.
    rows8 = max(8, ((B + 7) // 8) * 8)
    if rows8 <= _ROW_TILE:
        tile, rows = rows8, rows8
    else:
        tile = _ROW_TILE
        rows = ((rows8 + _ROW_TILE - 1) // _ROW_TILE) * _ROW_TILE
    grid = (rows // tile,)

    x2 = x_ncl.reshape(B, -1).astype(jnp.float32)     # (B, 112)
    x_tile = jnp.pad(x2, ((0, rows - B), (0, _LANE - x2.shape[1])))

    def w_spec(arr):  # full-array block, fetched once, VMEM-resident across steps
        return pl.BlockSpec(arr.shape, lambda i: (0, 0))

    weights = (prepared["cw0"], prepared["cb0"],
               prepared["cw1"], prepared["cb1"],
               prepared["cw2"], prepared["cb2"],
               prepared["fw1"], prepared["fb1"],
               prepared["w12"], prepared["b12"])

    x128_p, logits_p = pl.pallas_call(
        _cnn1d_fused_kernel,
        out_shape=(jax.ShapeDtypeStruct((rows, 128), jnp.float32),
                   jax.ShapeDtypeStruct((rows, _LANE), jnp.float32)),
        grid=grid,
        in_specs=[pl.BlockSpec((tile, _LANE), lambda i: (i, 0))]
                 + [w_spec(w) for w in weights],
        out_specs=(pl.BlockSpec((tile, 128), lambda i: (i, 0)),
                   pl.BlockSpec((tile, _LANE), lambda i: (i, 0))),
        compiler_params=pltpu.CompilerParams(
            dimension_semantics=("parallel",)),   # v7x: shard rows over both TCs
    )(x_tile, *weights)

    return x128_p[:B, :], logits_p[:B, :num_classes]


# ---------------------------------------------------------------------------
# Deterministic parameter init (same shapes as the PyTorch module __init__)
# ---------------------------------------------------------------------------
def init_params(key, num_classes=2):
    ks = jax.random.split(key, 10)

    def u(k, shape, fan_in):
        bound = 1.0 / jnp.sqrt(jnp.float32(fan_in))
        return jax.random.uniform(k, shape, jnp.float32, -bound, bound)

    return {
        "w1": u(ks[0], (16, 1, 8), 1 * 8),   "b1": u(ks[1], (16,), 1 * 8),
        "w2": u(ks[2], (32, 16, 8), 16 * 8), "b2": u(ks[3], (32,), 16 * 8),
        "w3": u(ks[4], (64, 32, 4), 32 * 4), "b3": u(ks[5], (64,), 32 * 4),
        "fc1_w": u(ks[6], (128, 64 * 3), 64 * 3),
        "fc1_b": u(ks[7], (128,), 64 * 3),
        "fc2_w": u(ks[8], (num_classes, 128), 128),
        "fc2_b": u(ks[9], (num_classes,), 128),
    }


if __name__ == "__main__":
    key = jax.random.PRNGKey(0)
    pkey, xkey = jax.random.split(key)
    params = init_params(pkey)
    prepared = prepare_params(params)   # one-time weight re-layout (off hot path)

    # fc1 expects 64*3 features => input_length = 112:
    # 112 -conv1/pool-> 28 -conv2/pool-> 7 -conv3/pool-> 3.
    B, input_length = 2, _L_IN
    x = jax.random.normal(xkey, (B, 1, input_length), dtype=jnp.float32)

    fwd = jax.jit(functools.partial(cnn1d_forward, prepared))
    x_128, output = fwd(x)
    jax.block_until_ready((x_128, output))
    assert x_128.shape == (B, 128) and output.shape == (B, 2)

    # Also exercise the gridded (large-batch) path once.
    xb = jax.random.normal(xkey, (600, 1, input_length), dtype=jnp.float32)
    xb_128, out_b = fwd(xb)
    jax.block_until_ready((xb_128, out_b))
    assert xb_128.shape == (600, 128) and out_b.shape == (600, 2)

    print("KERNEL_OK")
</pallas_src>

<mosaic_0001>
module attributes {stable_mosaic.version = 11 : i64} {
  func.func @_cnn1d_fused_kernel(%arg0: i32, %arg1: memref<8x128xf32, #tpu.memory_space<vmem>>, %arg2: memref<128x1024xbf16, #tpu.memory_space<vmem>>, %arg3: memref<1x1024xf32, #tpu.memory_space<vmem>>, %arg4: memref<512x512xbf16, #tpu.memory_space<vmem>>, %arg5: memref<1x512xf32, #tpu.memory_space<vmem>>, %arg6: memref<256x512xbf16, #tpu.memory_space<vmem>>, %arg7: memref<1x512xf32, #tpu.memory_space<vmem>>, %arg8: memref<256x128xbf16, #tpu.memory_space<vmem>>, %arg9: memref<1x128xf32, #tpu.memory_space<vmem>>, %arg10: memref<256x128xbf16, #tpu.memory_space<vmem>>, %arg11: memref<1x128xf32, #tpu.memory_space<vmem>>, %arg12: memref<8x128xf32, #tpu.memory_space<vmem>>, %arg13: memref<8x128xf32, #tpu.memory_space<vmem>>) attributes {dimension_semantics = [#tpu.dimension_semantics<parallel>], iteration_bounds = array<i64: 1>, scalar_prefetch = 0 : i64, scratch_operands = 0 : i64, tpu.core_type = #tpu.core_type<tc>, window_params = [{transform_indices = @transform_0, window_bounds = array<i64: 8, 128>}, {pipeline_mode = #tpu.pipeline_mode<synchronous>, transform_indices = @transform_1, window_bounds = array<i64: 128, 1024>}, {pipeline_mode = #tpu.pipeline_mode<synchronous>, transform_indices = @transform_2, window_bounds = array<i64: 1, 1024>}, {pipeline_mode = #tpu.pipeline_mode<synchronous>, transform_indices = @transform_3, window_bounds = array<i64: 512, 512>}, {pipeline_mode = #tpu.pipeline_mode<synchronous>, transform_indices = @transform_4, window_bounds = array<i64: 1, 512>}, {pipeline_mode = #tpu.pipeline_mode<synchronous>, transform_indices = @transform_5, window_bounds = array<i64: 256, 512>}, {pipeline_mode = #tpu.pipeline_mode<synchronous>, transform_indices = @transform_6, window_bounds = array<i64: 1, 512>}, {pipeline_mode = #tpu.pipeline_mode<synchronous>, transform_indices = @transform_7, window_bounds = array<i64: 256, 128>}, {pipeline_mode = #tpu.pipeline_mode<synchronous>, transform_indices = @transform_8, window_bounds = array<i64: 1, 128>}, {pipeline_mode = #tpu.pipeline_mode<synchronous>, transform_indices = @transform_9, window_bounds = array<i64: 256, 128>}, {pipeline_mode = #tpu.pipeline_mode<synchronous>, transform_indices = @transform_10, window_bounds = array<i64: 1, 128>}, {transform_indices = @transform_11, window_bounds = array<i64: 8, 128>}, {transform_indices = @transform_12, window_bounds = array<i64: 8, 128>}]} {
    %c0 = arith.constant 0 : index
    %c0_0 = arith.constant 0 : index
    %0 = vector.load %arg1[%c0, %c0_0] : memref<8x128xf32, #tpu.memory_space<vmem>>, vector<8x128xf32>
    %1 = arith.truncf %0 : vector<8x128xf32> to vector<8x128xbf16>
    %c0_1 = arith.constant 0 : index
    %c0_2 = arith.constant 0 : index
    %2 = vector.load %arg2[%c0_1, %c0_2] : memref<128x1024xbf16, #tpu.memory_space<vmem>>, vector<128x1024xbf16>
    %cst = arith.constant dense<0.000000e+00> : vector<8x1024xf32>
    %3 = tpu.matmul %1, %2, %cst {dimension_numbers = #tpu.dot_dimension_numbers<[1], [0], [0], [1], [0, 0, 1, 1], [], []>} : vector<8x128xbf16>, vector<128x1024xbf16>, vector<8x1024xf32> -> vector<8x1024xf32>
    %c0_3 = arith.constant 0 : index
    %c0_4 = arith.constant 0 : index
    %4 = vector.load %arg3[%c0_3, %c0_4] : memref<1x1024xf32, #tpu.memory_space<vmem>>, vector<1x1024xf32>
    %5 = vector.broadcast %4 : vector<1x1024xf32> to vector<8x1024xf32>
    %6 = arith.addf %3, %5 : vector<8x1024xf32>
    %cst_5 = arith.constant 0.000000e+00 : f32
    %7 = vector.broadcast %cst_5 : f32 to vector<8x1024xf32>
    %8 = arith.maximumf %6, %7 : vector<8x1024xf32>
    %9 = vector.extract_strided_slice %8 {offsets = [0, 0], sizes = [8, 512], strides = [1, 1]} : vector<8x1024xf32> to vector<8x512xf32>
    %10 = vector.extract_strided_slice %8 {offsets = [0, 512], sizes = [8, 512], strides = [1, 1]} : vector<8x1024xf32> to vector<8x512xf32>
    %11 = arith.maximumf %9, %10 : vector<8x512xf32>
    %12 = arith.truncf %11 : vector<8x512xf32> to vector<8x512xbf16>
    %c0_6 = arith.constant 0 : index
    %c0_7 = arith.constant 0 : index
    %13 = vector.load %arg4[%c0_6, %c0_7] : memref<512x512xbf16, #tpu.memory_space<vmem>>, vector<512x512xbf16>
    %cst_8 = arith.constant dense<0.000000e+00> : vector<8x512xf32>
    %14 = tpu.matmul %12, %13, %cst_8 {dimension_numbers = #tpu.dot_dimension_numbers<[1], [0], [0], [1], [0, 0, 1, 1], [], []>} : vector<8x512xbf16>, vector<512x512xbf16>, vector<8x512xf32> -> vector<8x512xf32>
    %c0_9 = arith.constant 0 : index
    %c0_10 = arith.constant 0 : index
    %15 = vector.load %arg5[%c0_9, %c0_10] : memref<1x512xf32, #tpu.memory_space<vmem>>, vector<1x512xf32>
    %16 = vector.broadcast %15 : vector<1x512xf32> to vector<8x512xf32>
    %17 = arith.addf %14, %16 : vector<8x512xf32>
    %cst_11 = arith.constant 0.000000e+00 : f32
    %18 = vector.broadcast %cst_11 : f32 to vector<8x512xf32>
    %19 = arith.maximumf %17, %18 : vector<8x512xf32>
    %20 = vector.extract_strided_slice %19 {offsets = [0, 0], sizes = [8, 256], strides = [1, 1]} : vector<8x512xf32> to vector<8x256xf32>
    %21 = vector.extract_strided_slice %19 {offsets = [0, 256], sizes = [8, 256], strides = [1, 1]} : vector<8x512xf32> to vector<8x256xf32>
    %22 = arith.maximumf %20, %21 : vector<8x256xf32>
    %23 = arith.truncf %22 : vector<8x256xf32> to vector<8x256xbf16>
    %c0_12 = arith.constant 0 : index
    %c0_13 = arith.constant 0 : index
    %24 = vector.load %arg6[%c0_12, %c0_13] : memref<256x512xbf16, #tpu.memory_space<vmem>>, vector<256x512xbf16>
    %cst_14 = arith.constant dense<0.000000e+00> : vector<8x512xf32>
    %25 = tpu.matmul %23, %24, %cst_14 {dimension_numbers = #tpu.dot_dimension_numbers<[1], [0], [0], [1], [0, 0, 1, 1], [], []>} : vector<8x256xbf16>, vector<256x512xbf16>, vector<8x512xf32> -> vector<8x512xf32>
    %c0_15 = arith.constant 0 : index
    %c0_16 = arith.constant 0 : index
    %26 = vector.load %arg7[%c0_15, %c0_16] : memref<1x512xf32, #tpu.memory_space<vmem>>, vector<1x512xf32>
    %27 = vector.broadcast %26 : vector<1x512xf32> to vector<8x512xf32>
    %28 = arith.addf %25, %27 : vector<8x512xf32>
    %cst_17 = arith.constant 0.000000e+00 : f32
    %29 = vector.broadcast %cst_17 : f32 to vector<8x512xf32>
    %30 = arith.maximumf %28, %29 : vector<8x512xf32>
    %31 = vector.extract_strided_slice %30 {offsets = [0, 0], sizes = [8, 256], strides = [1, 1]} : vector<8x512xf32> to vector<8x256xf32>
    %32 = vector.extract_strided_slice %30 {offsets = [0, 256], sizes = [8, 256], strides = [1, 1]} : vector<8x512xf32> to vector<8x256xf32>
    %33 = arith.maximumf %31, %32 : vector<8x256xf32>
    %34 = arith.truncf %33 : vector<8x256xf32> to vector<8x256xbf16>
    %c0_18 = arith.constant 0 : index
    %c0_19 = arith.constant 0 : index
    %35 = vector.load %arg8[%c0_18, %c0_19] : memref<256x128xbf16, #tpu.memory_space<vmem>>, vector<256x128xbf16>
    %cst_20 = arith.constant dense<0.000000e+00> : vector<8x128xf32>
    %36 = tpu.matmul %34, %35, %cst_20 {dimension_numbers = #tpu.dot_dimension_numbers<[1], [0], [0], [1], [0, 0, 1, 1], [], []>} : vector<8x256xbf16>, vector<256x128xbf16>, vector<8x128xf32> -> vector<8x128xf32>
    %c0_21 = arith.constant 0 : index
    %c0_22 = arith.constant 0 : index
    %37 = vector.load %arg9[%c0_21, %c0_22] : memref<1x128xf32, #tpu.memory_space<vmem>>, vector<1x128xf32>
    %38 = vector.broadcast %37 : vector<1x128xf32> to vector<8x128xf32>
    %39 = arith.addf %36, %38 : vector<8x128xf32>
    %c0_23 = arith.constant 0 : index
    %c0_24 = arith.constant 0 : index
    %40 = vector.load %arg12[%c0_23, %c0_24] : memref<8x128xf32, #tpu.memory_space<vmem>>, vector<8x128xf32>
    tpu.vector_store %arg12[%c0_23, %c0_24], %39 {strides = array<i32>} : memref<8x128xf32, #tpu.memory_space<vmem>>, vector<8x128xf32>,
    %c0_25 = arith.constant 0 : index
    %c0_26 = arith.constant 0 : index
    %41 = vector.load %arg10[%c0_25, %c0_26] : memref<256x128xbf16, #tpu.memory_space<vmem>>, vector<256x128xbf16>
    %cst_27 = arith.constant dense<0.000000e+00> : vector<8x128xf32>
    %42 = tpu.matmul %34, %41, %cst_27 {dimension_numbers = #tpu.dot_dimension_numbers<[1], [0], [0], [1], [0, 0, 1, 1], [], []>} : vector<8x256xbf16>, vector<256x128xbf16>, vector<8x128xf32> -> vector<8x128xf32>
    %c0_28 = arith.constant 0 : index
    %c0_29 = arith.constant 0 : index
    %43 = vector.load %arg11[%c0_28, %c0_29] : memref<1x128xf32, #tpu.memory_space<vmem>>, vector<1x128xf32>
    %44 = vector.broadcast %43 : vector<1x128xf32> to vector<8x128xf32>
    %45 = arith.addf %42, %44 : vector<8x128xf32>
    %c0_30 = arith.constant 0 : index
    %c0_31 = arith.constant 0 : index
    %46 = vector.load %arg13[%c0_30, %c0_31] : memref<8x128xf32, #tpu.memory_space<vmem>>, vector<8x128xf32>
    tpu.vector_store %arg13[%c0_30, %c0_31], %45 {strides = array<i32>} : memref<8x128xf32, #tpu.memory_space<vmem>>, vector<8x128xf32>,
    return
  }
  func.func @transform_0(%arg0: i32) -> (i32, i32) {
    %c0_i32 = arith.constant 0 : i32
    %c0_i32_0 = arith.constant 0 : i32
    return %arg0, %c0_i32 : i32, i32
  }
  func.func @transform_1(%arg0: i32) -> (i32, i32) {
    %c0_i32 = arith.constant 0 : i32
    %c0_i32_0 = arith.constant 0 : i32
    %c0_i32_1 = arith.constant 0 : i32
    return %c0_i32, %c0_i32_0 : i32, i32
  }
  func.func @transform_2(%arg0: i32) -> (i32, i32) {
    %c0_i32 = arith.constant 0 : i32
    %c0_i32_0 = arith.constant 0 : i32
    %c0_i32_1 = arith.constant 0 : i32
    return %c0_i32, %c0_i32_0 : i32, i32
  }
  func.func @transform_3(%arg0: i32) -> (i32, i32) {
    %c0_i32 = arith.constant 0 : i32
    %c0_i32_0 = arith.constant 0 : i32
    %c0_i32_1 = arith.constant 0 : i32
    return %c0_i32, %c0_i32_0 : i32, i32
  }
  func.func @transform_4(%arg0: i32) -> (i32, i32) {
    %c0_i32 = arith.constant 0 : i32
    %c0_i32_0 = arith.constant 0 : i32
    %c0_i32_1 = arith.constant 0 : i32
    return %c0_i32, %c0_i32_0 : i32, i32
  }
  func.func @transform_5(%arg0: i32) -> (i32, i32) {
    %c0_i32 = arith.constant 0 : i32
    %c0_i32_0 = arith.constant 0 : i32
    %c0_i32_1 = arith.constant 0 : i32
    return %c0_i32, %c0_i32_0 : i32, i32
  }
  func.func @transform_6(%arg0: i32) -> (i32, i32) {
    %c0_i32 = arith.constant 0 : i32
    %c0_i32_0 = arith.constant 0 : i32
    %c0_i32_1 = arith.constant 0 : i32
    return %c0_i32, %c0_i32_0 : i32, i32
  }
  func.func @transform_7(%arg0: i32) -> (i32, i32) {
    %c0_i32 = arith.constant 0 : i32
    %c0_i32_0 = arith.constant 0 : i32
    %c0_i32_1 = arith.constant 0 : i32
    return %c0_i32, %c0_i32_0 : i32, i32
  }
  func.func @transform_8(%arg0: i32) -> (i32, i32) {
    %c0_i32 = arith.constant 0 : i32
    %c0_i32_0 = arith.constant 0 : i32
    %c0_i32_1 = arith.constant 0 : i32
    return %c0_i32, %c0_i32_0 : i32, i32
  }
  func.func @transform_9(%arg0: i32) -> (i32, i32) {
    %c0_i32 = arith.constant 0 : i32
    %c0_i32_0 = arith.constant 0 : i32
    %c0_i32_1 = arith.constant 0 : i32
    return %c0_i32, %c0_i32_0 : i32, i32
  }
  func.func @transform_10(%arg0: i32) -> (i32, i32) {
    %c0_i32 = arith.constant 0 : i32
    %c0_i32_0 = arith.constant 0 : i32
    %c0_i32_1 = arith.constant 0 : i32
    return %c0_i32, %c0_i32_0 : i32, i32
  }
  func.func @transform_11(%arg0: i32) -> (i32, i32) {
    %c0_i32 = arith.constant 0 : i32
    %c0_i32_0 = arith.constant 0 : i32
    return %arg0, %c0_i32 : i32, i32
  }
  func.func @transform_12(%arg0: i32) -> (i32, i32) {
    %c0_i32 = arith.constant 0 : i32
    %c0_i32_0 = arith.constant 0 : i32
    return %arg0, %c0_i32 : i32, i32
  }
}

</mosaic_0001>

<llo_original>
// kernel: cnn1d_forward.1
$region0: #{cnn1d_forward.1}
  #allocation0 [shape = 'u32[]', space=smem, size = 0x4, offset = 0x4, fixed_abs, tag = 'smem constant byte address 0x4 - core index']
  #allocation1 [shape = 'u32[144,128]{1,0:T(1,128)}', space=vmem, size = 0x12000, scoped, tag = 'internal scratch']
  %s0 = inlined_call_operand.vmem [shape: f32[8,128], index: 0, kind: input, shape index: {}]
  %s1 = inlined_call_operand.vmem [shape: bf16[128,1024], index: 1, kind: input, shape index: {}]
  %s2 = inlined_call_operand.vmem [shape: f32[1,1024], index: 2, kind: input, shape index: {}]
  %s3 = inlined_call_operand.vmem [shape: bf16[512,512], index: 3, kind: input, shape index: {}]
  %s4 = inlined_call_operand.vmem [shape: f32[1,512], index: 4, kind: input, shape index: {}]
  %s5 = inlined_call_operand.vmem [shape: bf16[256,512], index: 5, kind: input, shape index: {}]
  %s6 = inlined_call_operand.vmem [shape: f32[1,512], index: 6, kind: input, shape index: {}]
  %s7 = inlined_call_operand.vmem [shape: bf16[256,128], index: 7, kind: input, shape index: {}]
  %s8 = inlined_call_operand.vmem [shape: f32[1,128], index: 8, kind: input, shape index: {}]
  %s9 = inlined_call_operand.vmem [shape: bf16[256,128], index: 9, kind: input, shape index: {}]
  %s10 = inlined_call_operand.vmem [shape: f32[1,128], index: 10, kind: input, shape index: {}]
  %s11 = inlined_call_operand.vmem [shape: f32[8,128], index: 11, kind: output, shape index: {0}]
  %s12 = inlined_call_operand.vmem [shape: f32[8,128], index: 12, kind: output, shape index: {1}]
  %13 = xla_tuple %s11, %s12
  %s14 = sld [smem:[#allocation0]]
  $region62: #{cnn1d_forward.1} parent=0
    _
  %s16 = ssub.s32 1, %s14
  %s17 = scalar_select 0, %s16, %s14
  // Predicated region
  $region2: #{cnn1d_forward.1} parent=0 // pred_check
    _
  $region3: #{cnn1d_forward.1} parent=0 // pred_check_branch
    %19 = sbr.rel (0) target = $region5
  $region4: #{cnn1d_forward.1} parent=0 // pred_region
    _
  $region5: #{cnn1d_forward.1} parent=0 // pred_fallthru
    _
  // Predicated region
  $region6: #{cnn1d_forward.1} parent=0 // pred_check
    _
  $region7: #{cnn1d_forward.1} parent=0 // pred_check_branch
    %21 = sbr.rel (0) target = $region9
  $region8: #{cnn1d_forward.1} parent=0 // pred_region
    _
  $region9: #{cnn1d_forward.1} parent=0 // pred_fallthru
    _
  // Predicated region
  $region10: #{cnn1d_forward.1} parent=0 // pred_check
    _
  $region11: #{cnn1d_forward.1} parent=0 // pred_check_branch
    %23 = sbr.rel (0) target = $region13
  $region12: #{cnn1d_forward.1} parent=0 // pred_region
    _
  $region13: #{cnn1d_forward.1} parent=0 // pred_fallthru
    _
  // Predicated region
  $region14: #{cnn1d_forward.1} parent=0 // pred_check
    _
  $region15: #{cnn1d_forward.1} parent=0 // pred_check_branch
    %25 = sbr.rel (0) target = $region17
  $region16: #{cnn1d_forward.1} parent=0 // pred_region
    _
  $region17: #{cnn1d_forward.1} parent=0 // pred_fallthru
    _
  // Predicated region
  $region18: #{cnn1d_forward.1} parent=0 // pred_check
    _
  $region19: #{cnn1d_forward.1} parent=0 // pred_check_branch
    %27 = sbr.rel (0) target = $region21
  $region20: #{cnn1d_forward.1} parent=0 // pred_region
    _
  $region21: #{cnn1d_forward.1} parent=0 // pred_fallthru
    _
  // Predicated region
  $region22: #{cnn1d_forward.1} parent=0 // pred_check
    _
  $region23: #{cnn1d_forward.1} parent=0 // pred_check_branch
    %29 = sbr.rel (0) target = $region25
  $region24: #{cnn1d_forward.1} parent=0 // pred_region
    _
  $region25: #{cnn1d_forward.1} parent=0 // pred_fallthru
    _
  // Predicated region
  $region26: #{cnn1d_forward.1} parent=0 // pred_check
    _
  $region27: #{cnn1d_forward.1} parent=0 // pred_check_branch
    %31 = sbr.rel (0) target = $region29
  $region28: #{cnn1d_forward.1} parent=0 // pred_region
    _
  $region29: #{cnn1d_forward.1} parent=0 // pred_fallthru
    _
  // Predicated region
  $region30: #{cnn1d_forward.1} parent=0 // pred_check
    _
  $region31: #{cnn1d_forward.1} parent=0 // pred_check_branch
    %33 = sbr.rel (0) target = $region33
  $region32: #{cnn1d_forward.1} parent=0 // pred_region
    _
  $region33: #{cnn1d_forward.1} parent=0 // pred_fallthru
    _
  // Predicated region
  $region34: #{cnn1d_forward.1} parent=0 // pred_check
    _
  $region35: #{cnn1d_forward.1} parent=0 // pred_check_branch
    %35 = sbr.rel (0) target = $region37
  $region36: #{cnn1d_forward.1} parent=0 // pred_region
    _
  $region37: #{cnn1d_forward.1} parent=0 // pred_fallthru
    _
  // Predicated region
  $region38: #{cnn1d_forward.1} parent=0 // pred_check
    _
  $region39: #{cnn1d_forward.1} parent=0 // pred_check_branch
    %37 = sbr.rel (0) target = $region41
  $region40: #{cnn1d_forward.1} parent=0 // pred_region
    _
  $region41: #{cnn1d_forward.1} parent=0 // pred_fallthru
    _
  // Predicated region
  $region42: #{cnn1d_forward.1} parent=0 // pred_check
    _
  $region43: #{cnn1d_forward.1} parent=0 // pred_check_branch
    %39 = sbr.rel (0) target = $region45
  $region44: #{cnn1d_forward.1} parent=0 // pred_region
    _
  $region45: #{cnn1d_forward.1} parent=0 // pred_fallthru
    _
  %v41 = vld [vmem:[%s0] sm:$0xff]
  %v42 = vpack.c.bf16 %v41, %v41
  %v43 = vld [vmem:[%s1] sm:$0xff]
  %v44 = vld [vmem:[%s1 + $0x8] sm:$0xff]
  %v45 = vld [vmem:[%s1 + $0x10] sm:$0xff]
  %v46 = vld [vmem:[%s1 + $0x18] sm:$0xff]
  %v47 = vld [vmem:[%s1 + $0x20] sm:$0xff]
  %v48 = vld [vmem:[%s1 + $0x28] sm:$0xff]
  %v49 = vld [vmem:[%s1 + $0x30] sm:$0xff]
  %v50 = vld [vmem:[%s1 + $0x38] sm:$0xff]
  %v51 = vld [vmem:[%s1 + $0x40] sm:$0xff]
  %v52 = vld [vmem:[%s1 + $0x48] sm:$0xff]
  %v53 = vld [vmem:[%s1 + $0x50] sm:$0xff]
  %v54 = vld [vmem:[%s1 + $0x58] sm:$0xff]
  %v55 = vld [vmem:[%s1 + $0x60] sm:$0xff]
  %v56 = vld [vmem:[%s1 + $0x68] sm:$0xff]
  %v57 = vld [vmem:[%s1 + $0x70] sm:$0xff]
  %v58 = vld [vmem:[%s1 + $0x78] sm:$0xff]
  %v59 = vld [vmem:[%s1 + $0x80] sm:$0xff]
  %v60 = vld [vmem:[%s1 + $0x88] sm:$0xff]
  %v61 = vld [vmem:[%s1 + $0x90] sm:$0xff]
  %v62 = vld [vmem:[%s1 + $0x98] sm:$0xff]
  %v63 = vld [vmem:[%s1 + $0xa0] sm:$0xff]
  %v64 = vld [vmem:[%s1 + $0xa8] sm:$0xff]
  %v65 = vld [vmem:[%s1 + $0xb0] sm:$0xff]
  %v66 = vld [vmem:[%s1 + $0xb8] sm:$0xff]
  %v67 = vld [vmem:[%s1 + $0xc0] sm:$0xff]
  %v68 = vld [vmem:[%s1 + $0xc8] sm:$0xff]
  %v69 = vld [vmem:[%s1 + $0xd0] sm:$0xff]
  %v70 = vld [vmem:[%s1 + $0xd8] sm:$0xff]
  %v71 = vld [vmem:[%s1 + $0xe0] sm:$0xff]
  %v72 = vld [vmem:[%s1 + $0xe8] sm:$0xff]
  %v73 = vld [vmem:[%s1 + $0xf0] sm:$0xff]
  %v74 = vld [vmem:[%s1 + $0xf8] sm:$0xff]
  %v75 = vld [vmem:[%s1 + $0x100] sm:$0xff]
  %v76 = vld [vmem:[%s1 + $0x108] sm:$0xff]
  %v77 = vld [vmem:[%s1 + $0x110] sm:$0xff]
  %v78 = vld [vmem:[%s1 + $0x118] sm:$0xff]
  %v79 = vld [vmem:[%s1 + $0x120] sm:$0xff]
  %v80 = vld [vmem:[%s1 + $0x128] sm:$0xff]
  %v81 = vld [vmem:[%s1 + $0x130] sm:$0xff]
  %v82 = vld [vmem:[%s1 + $0x138] sm:$0xff]
  %v83 = vld [vmem:[%s1 + $0x140] sm:$0xff]
  %v84 = vld [vmem:[%s1 + $0x148] sm:$0xff]
  %v85 = vld [vmem:[%s1 + $0x150] sm:$0xff]
  %v86 = vld [vmem:[%s1 + $0x158] sm:$0xff]
  %v87 = vld [vmem:[%s1 + $0x160] sm:$0xff]
  %v88 = vld [vmem:[%s1 + $0x168] sm:$0xff]
  %v89 = vld [vmem:[%s1 + $0x170] sm:$0xff]
  %v90 = vld [vmem:[%s1 + $0x178] sm:$0xff]
  %v91 = vld [vmem:[%s1 + $0x180] sm:$0xff]
  %v92 = vld [vmem:[%s1 + $0x188] sm:$0xff]
  %v93 = vld [vmem:[%s1 + $0x190] sm:$0xff]
  %v94 = vld [vmem:[%s1 + $0x198] sm:$0xff]
  %v95 = vld [vmem:[%s1 + $0x1a0] sm:$0xff]
  %v96 = vld [vmem:[%s1 + $0x1a8] sm:$0xff]
  %v97 = vld [vmem:[%s1 + $0x1b0] sm:$0xff]
  %v98 = vld [vmem:[%s1 + $0x1b8] sm:$0xff]
  %v99 = vld [vmem:[%s1 + $0x1c0] sm:$0xff]
  %v100 = vld [vmem:[%s1 + $0x1c8] sm:$0xff]
  %v101 = vld [vmem:[%s1 + $0x1d0] sm:$0xff]
  %v102 = vld [vmem:[%s1 + $0x1d8] sm:$0xff]
  %v103 = vld [vmem:[%s1 + $0x1e0] sm:$0xff]
  %v104 = vld [vmem:[%s1 + $0x1e8] sm:$0xff]
  %v105 = vld [vmem:[%s1 + $0x1f0] sm:$0xff]
  %v106 = vld [vmem:[%s1 + $0x1f8] sm:$0xff]
  %v107 = vld [vmem:[%s2] sm:$0xff]
  %v109 = vlaneseq
  %v110 = vshrl.u32 %v109, 7
  %v111 = vsub.s32 0, %v110
  %v112 = vrot.slane %v107, %v111
  %v113 = vlaneseq
  %v114 = vshrl.u32 %v113, 7
  %v115 = vsub.s32 1, %v114
  %v116 = vrot.slane %v107, %v115
  %v117 = vlaneseq
  %v118 = vshrl.u32 %v117, 7
  %v119 = vsub.s32 2, %v118
  %v120 = vrot.slane %v107, %v119
  %v121 = vlaneseq
  %v122 = vshrl.u32 %v121, 7
  %v123 = vsub.s32 3, %v122
  %v124 = vrot.slane %v107, %v123
  %v125 = vlaneseq
  %v126 = vshrl.u32 %v125, 7
  %v127 = vsub.s32 4, %v126
  %v128 = vrot.slane %v107, %v127
  %v129 = vlaneseq
  %v130 = vshrl.u32 %v129, 7
  %v131 = vsub.s32 5, %v130
  %v132 = vrot.slane %v107, %v131
  %v133 = vlaneseq
  %v134 = vshrl.u32 %v133, 7
  %v135 = vsub.s32 6, %v134
  %v136 = vrot.slane %v107, %v135
  %v137 = vlaneseq
  %v138 = vshrl.u32 %v137, 7
  %v139 = vsub.s32 7, %v138
  %v140 = vrot.slane %v107, %v139
  %v213 = vunpack.c.l.b16 %v43
  %v214 = vunpack.c.h.b16 %v43
  %v215 = vunpack.c.l.b16 %v44
  %v216 = vunpack.c.h.b16 %v44
  %v217 = vunpack.c.l.b16 %v45
  %v218 = vunpack.c.h.b16 %v45
  %v219 = vunpack.c.l.b16 %v46
  %v220 = vunpack.c.h.b16 %v46
  %v221 = vunpack.c.l.b16 %v47
  %v222 = vunpack.c.h.b16 %v47
  %v223 = vunpack.c.l.b16 %v48
  %v224 = vunpack.c.h.b16 %v48
  %v225 = vunpack.c.l.b16 %v49
  %v226 = vunpack.c.h.b16 %v49
  %v227 = vunpack.c.l.b16 %v50
  %v228 = vunpack.c.h.b16 %v50
  %v229 = vunpack.c.l.b16 %v51
  %v230 = vunpack.c.h.b16 %v51
  %v231 = vunpack.c.l.b16 %v52
  %v232 = vunpack.c.h.b16 %v52
  %v233 = vunpack.c.l.b16 %v53
  %v234 = vunpack.c.h.b16 %v53
  %v235 = vunpack.c.l.b16 %v54
  %v236 = vunpack.c.h.b16 %v54
  %v237 = vunpack.c.l.b16 %v55
  %v238 = vunpack.c.h.b16 %v55
  %v239 = vunpack.c.l.b16 %v56
  %v240 = vunpack.c.h.b16 %v56
  %v241 = vunpack.c.l.b16 %v57
  %v242 = vunpack.c.h.b16 %v57
  %v243 = vunpack.c.l.b16 %v58
  %v244 = vunpack.c.h.b16 %v58
  %v245 = vunpack.c.l.b16 %v59
  %v246 = vunpack.c.h.b16 %v59
  %v247 = vunpack.c.l.b16 %v60
  %v248 = vunpack.c.h.b16 %v60
  %v249 = vunpack.c.l.b16 %v61
  %v250 = vunpack.c.h.b16 %v61
  %v251 = vunpack.c.l.b16 %v62
  %v252 = vunpack.c.h.b16 %v62
  %v253 = vunpack.c.l.b16 %v63
  %v254 = vunpack.c.h.b16 %v63
  %v255 = vunpack.c.l.b16 %v64
  %v256 = vunpack.c.h.b16 %v64
  %v257 = vunpack.c.l.b16 %v65
  %v258 = vunpack.c.h.b16 %v65
  %v259 = vunpack.c.l.b16 %v66
  %v260 = vunpack.c.h.b16 %v66
  %v261 = vunpack.c.l.b16 %v67
  %v262 = vunpack.c.h.b16 %v67
  %v263 = vunpack.c.l.b16 %v68
  %v264 = vunpack.c.h.b16 %v68
  %v265 = vunpack.c.l.b16 %v69
  %v266 = vunpack.c.h.b16 %v69
  %v267 = vunpack.c.l.b16 %v70
  %v268 = vunpack.c.h.b16 %v70
  %v269 = vunpack.c.l.b16 %v71
  %v270 = vunpack.c.h.b16 %v71
  %v271 = vunpack.c.l.b16 %v72
  %v272 = vunpack.c.h.b16 %v72
  %v273 = vunpack.c.l.b16 %v73
  %v274 = vunpack.c.h.b16 %v73
  %v275 = vunpack.c.l.b16 %v74
  %v276 = vunpack.c.h.b16 %v74
  %v277 = vunpack.c.l.b16 %v75
  %v278 = vunpack.c.h.b16 %v75
  %v279 = vunpack.c.l.b16 %v76
  %v280 = vunpack.c.h.b16 %v76
  %v281 = vunpack.c.l.b16 %v77
  %v282 = vunpack.c.h.b16 %v77
  %v283 = vunpack.c.l.b16 %v78
  %v284 = vunpack.c.h.b16 %v78
  %v285 = vunpack.c.l.b16 %v79
  %v286 = vunpack.c.h.b16 %v79
  %v287 = vunpack.c.l.b16 %v80
  %v288 = vunpack.c.h.b16 %v80
  %v289 = vunpack.c.l.b16 %v81
  %v290 = vunpack.c.h.b16 %v81
  %v291 = vunpack.c.l.b16 %v82
  %v292 = vunpack.c.h.b16 %v82
  %v293 = vunpack.c.l.b16 %v83
  %v294 = vunpack.c.h.b16 %v83
  %v295 = vunpack.c.l.b16 %v84
  %v296 = vunpack.c.h.b16 %v84
  %v297 = vunpack.c.l.b16 %v85
  %v298 = vunpack.c.h.b16 %v85
  %v299 = vunpack.c.l.b16 %v86
  %v300 = vunpack.c.h.b16 %v86
  %v301 = vunpack.c.l.b16 %v87
  %v302 = vunpack.c.h.b16 %v87
  %v303 = vunpack.c.l.b16 %v88
  %v304 = vunpack.c.h.b16 %v88
  %v305 = vunpack.c.l.b16 %v89
  %v306 = vunpack.c.h.b16 %v89
  %v307 = vunpack.c.l.b16 %v90
  %v308 = vunpack.c.h.b16 %v90
  %v309 = vunpack.c.l.b16 %v91
  %v310 = vunpack.c.h.b16 %v91
  %v311 = vunpack.c.l.b16 %v92
  %v312 = vunpack.c.h.b16 %v92
  %v313 = vunpack.c.l.b16 %v93
  %v314 = vunpack.c.h.b16 %v93
  %v315 = vunpack.c.l.b16 %v94
  %v316 = vunpack.c.h.b16 %v94
  %v317 = vunpack.c.l.b16 %v95
  %v318 = vunpack.c.h.b16 %v95
  %v319 = vunpack.c.l.b16 %v96
  %v320 = vunpack.c.h.b16 %v96
  %v321 = vunpack.c.l.b16 %v97
  %v322 = vunpack.c.h.b16 %v97
  %v323 = vunpack.c.l.b16 %v98
  %v324 = vunpack.c.h.b16 %v98
  %v325 = vunpack.c.l.b16 %v99
  %v326 = vunpack.c.h.b16 %v99
  %v327 = vunpack.c.l.b16 %v100
  %v328 = vunpack.c.h.b16 %v100
  %v329 = vunpack.c.l.b16 %v101
  %v330 = vunpack.c.h.b16 %v101
  %v331 = vunpack.c.l.b16 %v102
  %v332 = vunpack.c.h.b16 %v102
  %v333 = vunpack.c.l.b16 %v103
  %v334 = vunpack.c.h.b16 %v103
  %v335 = vunpack.c.l.b16 %v104
  %v336 = vunpack.c.h.b16 %v104
  %v337 = vunpack.c.l.b16 %v105
  %v338 = vunpack.c.h.b16 %v105
  %v339 = vunpack.c.l.b16 %v106
  %v340 = vunpack.c.h.b16 %v106
  %v341 = vpack.c.b16 %v221, %v213
  %v342 = vpack.c.b16 %v222, %v214
  %v343 = vpack.c.b16 %v223, %v215
  %v344 = vpack.c.b16 %v224, %v216
  %v345 = vpack.c.b16 %v225, %v217
  %v346 = vpack.c.b16 %v226, %v218
  %v347 = vpack.c.b16 %v227, %v219
  %v348 = vpack.c.b16 %v228, %v220
  %v349 = vpack.c.b16 %v237, %v229
  %v350 = vpack.c.b16 %v238, %v230
  %v351 = vpack.c.b16 %v239, %v231
  %v352 = vpack.c.b16 %v240, %v232
  %v353 = vpack.c.b16 %v241, %v233
  %v354 = vpack.c.b16 %v242, %v234
  %v355 = vpack.c.b16 %v243, %v235
  %v356 = vpack.c.b16 %v244, %v236
  %v357 = vpack.c.b16 %v253, %v245
  %v358 = vpack.c.b16 %v254, %v246
  %v359 = vpack.c.b16 %v255, %v247
  %v360 = vpack.c.b16 %v256, %v248
  %v361 = vpack.c.b16 %v257, %v249
  %v362 = vpack.c.b16 %v258, %v250
  %v363 = vpack.c.b16 %v259, %v251
  %v364 = vpack.c.b16 %v260, %v252
  %v365 = vpack.c.b16 %v269, %v261
  %v366 = vpack.c.b16 %v270, %v262
  %v367 = vpack.c.b16 %v271, %v263
  %v368 = vpack.c.b16 %v272, %v264
  %v369 = vpack.c.b16 %v273, %v265
  %v370 = vpack.c.b16 %v274, %v266
  %v371 = vpack.c.b16 %v275, %v267
  %v372 = vpack.c.b16 %v276, %v268
  %v373 = vpack.c.b16 %v285, %v277
  %v374 = vpack.c.b16 %v286, %v278
  %v375 = vpack.c.b16 %v287, %v279
  %v376 = vpack.c.b16 %v288, %v280
  %v377 = vpack.c.b16 %v289, %v281
  %v378 = vpack.c.b16 %v290, %v282
  %v379 = vpack.c.b16 %v291, %v283
  %v380 = vpack.c.b16 %v292, %v284
  %v381 = vpack.c.b16 %v301, %v293
  %v382 = vpack.c.b16 %v302, %v294
  %v383 = vpack.c.b16 %v303, %v295
  %v384 = vpack.c.b16 %v304, %v296
  %v385 = vpack.c.b16 %v305, %v297
  %v386 = vpack.c.b16 %v306, %v298
  %v387 = vpack.c.b16 %v307, %v299
  %v388 = vpack.c.b16 %v308, %v300
  %v389 = vpack.c.b16 %v317, %v309
  %v390 = vpack.c.b16 %v318, %v310
  %v391 = vpack.c.b16 %v319, %v311
  %v392 = vpack.c.b16 %v320, %v312
  %v393 = vpack.c.b16 %v321, %v313
  %v394 = vpack.c.b16 %v322, %v314
  %v395 = vpack.c.b16 %v323, %v315
  %v396 = vpack.c.b16 %v324, %v316
  %v397 = vpack.c.b16 %v333, %v325
  %v398 = vpack.c.b16 %v334, %v326
  %v399 = vpack.c.b16 %v335, %v327
  %v400 = vpack.c.b16 %v336, %v328
  %v401 = vpack.c.b16 %v337, %v329
  %v402 = vpack.c.b16 %v338, %v330
  %v403 = vpack.c.b16 %v339, %v331
  %v404 = vpack.c.b16 %v340, %v332
  %469 = vmatprep.subr.bf16.mxu0 %v342
  %470 = vmatpush1.bf16.msra.mxu0 %v341
  %471 = vmatprep.subr.bf16.mxu0 %v350
  %472 = vmatpush1.bf16.msra.mxu0 %v349
  %473 = vmatprep.subr.bf16.mxu0 %v358
  %474 = vmatpush1.bf16.msra.mxu0 %v357
  %475 = vmatprep.subr.bf16.mxu0 %v366
  %476 = vmatpush1.bf16.msra.mxu0 %v365
  %477 = vmatprep.subr.bf16.mxu0 %v374
  %478 = vmatpush1.bf16.msra.mxu0 %v373
  %479 = vmatprep.subr.bf16.mxu0 %v382
  %480 = vmatpush1.bf16.msra.mxu0 %v381
  %481 = vmatprep.subr.bf16.mxu0 %v390
  %482 = vmatpush1.bf16.msra.mxu0 %v389
  %483 = vmatprep.subr.bf16.mxu0 %v398
  %484 = vmatpush1.bf16.msra.mxu0 %v397
  %485 = vmatprep.subr.bf16.mxu0 0
  %486 = vmatpush1.bf16.msra.mxu0 0
  %487 = vmatprep.subr.bf16.mxu0 0
  %488 = vmatpush1.bf16.msra.mxu0 0
  %489 = vmatprep.subr.bf16.mxu0 0
  %490 = vmatpush1.bf16.msra.mxu0 0
  %491 = vmatprep.subr.bf16.mxu0 0
  %492 = vmatpush1.bf16.msra.mxu0 0
  %493 = vmatprep.subr.bf16.mxu0 0
  %494 = vmatpush1.bf16.msra.mxu0 0
  %495 = vmatprep.subr.bf16.mxu0 0
  %496 = vmatpush1.bf16.msra.mxu0 0
  %497 = vmatprep.subr.bf16.mxu0 0
  %498 = vmatpush1.bf16.msra.mxu0 0
  %499 = vmatprep.subr.bf16.mxu0 0
  %500 = vmatpush1.bf16.msra.mxu0 0
  %501 = vmatprep.mubr.bf16.mxu0 0
  %502 = vmatmul.mubr.bf16.gmra.mrb[0].mxu0 %v42
  %v503 = vpop.f32.mrb[0].mxu0
  %v504 = vadd.f32 %v112, %v503
  %v505 = vpop.f32.mrb[0].mxu0
  %v506 = vadd.f32 %v116, %v505
  %v507 = vpop.f32.mrb[0].mxu0
  %v508 = vpop.f32.mrb[0].mxu0
  %509 = vdwg.mxu0
  %510 = vmatprep.subr.bf16.mxu0 %v344
  %511 = vmatpush1.bf16.msra.mxu0 %v343
  %512 = vmatprep.subr.bf16.mxu0 %v352
  %513 = vmatpush1.bf16.msra.mxu0 %v351
  %514 = vmatprep.subr.bf16.mxu0 %v360
  %515 = vmatpush1.bf16.msra.mxu0 %v359
  %516 = vmatprep.subr.bf16.mxu0 %v368
  %517 = vmatpush1.bf16.msra.mxu0 %v367
  %518 = vmatprep.subr.bf16.mxu0 %v376
  %519 = vmatpush1.bf16.msra.mxu0 %v375
  %520 = vmatprep.subr.bf16.mxu0 %v384
  %521 = vmatpush1.bf16.msra.mxu0 %v383
  %522 = vmatprep.subr.bf16.mxu0 %v392
  %523 = vmatpush1.bf16.msra.mxu0 %v391
  %524 = vmatprep.subr.bf16.mxu0 %v400
  %525 = vmatpush1.bf16.msra.mxu0 %v399
  %526 = vmatprep.subr.bf16.mxu0 0
  %527 = vmatpush1.bf16.msra.mxu0 0
  %528 = vmatprep.subr.bf16.mxu0 0
  %529 = vmatpush1.bf16.msra.mxu0 0
  %530 = vmatprep.subr.bf16.mxu0 0
  %531 = vmatpush1.bf16.msra.mxu0 0
  %532 = vmatprep.subr.bf16.mxu0 0
  %533 = vmatpush1.bf16.msra.mxu0 0
  %534 = vmatprep.subr.bf16.mxu0 0
  %535 = vmatpush1.bf16.msra.mxu0 0
  %536 = vmatprep.subr.bf16.mxu0 0
  %537 = vmatpush1.bf16.msra.mxu0 0
  %538 = vmatprep.subr.bf16.mxu0 0
  %539 = vmatpush1.bf16.msra.mxu0 0
  %540 = vmatprep.subr.bf16.mxu0 0
  %541 = vmatpush1.bf16.msra.mxu0 0
  %542 = vmatprep.mubr.bf16.mxu0 0
  %543 = vmatmul.mubr.bf16.gmra.mrb[0].mxu0 %v42
  %v544 = vpop.f32.mrb[0].mxu0
  %v545 = vadd.f32 %v120, %v544
  %v546 = vpop.f32.mrb[0].mxu0
  %v547 = vadd.f32 %v124, %v546
  %v548 = vpop.f32.mrb[0].mxu0
  %v549 = vpop.f32.mrb[0].mxu0
  %550 = vdwg.mxu0
  %551 = vmatprep.subr.bf16.mxu0 %v346
  %552 = vmatpush1.bf16.msra.mxu0 %v345
  %553 = vmatprep.subr.bf16.mxu0 %v354
  %554 = vmatpush1.bf16.msra.mxu0 %v353
  %555 = vmatprep.subr.bf16.mxu0 %v362
  %556 = vmatpush1.bf16.msra.mxu0 %v361
  %557 = vmatprep.subr.bf16.mxu0 %v370
  %558 = vmatpush1.bf16.msra.mxu0 %v369
  %559 = vmatprep.subr.bf16.mxu0 %v378
  %560 = vmatpush1.bf16.msra.mxu0 %v377
  %561 = vmatprep.subr.bf16.mxu0 %v386
  %562 = vmatpush1.bf16.msra.mxu0 %v385
  %563 = vmatprep.subr.bf16.mxu0 %v394
  %564 = vmatpush1.bf16.msra.mxu0 %v393
  %565 = vmatprep.subr.bf16.mxu0 %v402
  %566 = vmatpush1.bf16.msra.mxu0 %v401
  %567 = vmatprep.subr.bf16.mxu0 0
  %568 = vmatpush1.bf16.msra.mxu0 0
  %569 = vmatprep.subr.bf16.mxu0 0
  %570 = vmatpush1.bf16.msra.mxu0 0
  %571 = vmatprep.subr.bf16.mxu0 0
  %572 = vmatpush1.bf16.msra.mxu0 0
  %573 = vmatprep.subr.bf16.mxu0 0
  %574 = vmatpush1.bf16.msra.mxu0 0
  %575 = vmatprep.subr.bf16.mxu0 0
  %576 = vmatpush1.bf16.msra.mxu0 0
  %577 = vmatprep.subr.bf16.mxu0 0
  %578 = vmatpush1.bf16.msra.mxu0 0
  %579 = vmatprep.subr.bf16.mxu0 0
  %580 = vmatpush1.bf16.msra.mxu0 0
  %581 = vmatprep.subr.bf16.mxu0 0
  %582 = vmatpush1.bf16.msra.mxu0 0
  %583 = vmatprep.mubr.bf16.mxu0 0
  %584 = vmatmul.mubr.bf16.gmra.mrb[0].mxu0 %v42
  %v585 = vpop.f32.mrb[0].mxu0
  %v586 = vadd.f32 %v128, %v585
  %v587 = vpop.f32.mrb[0].mxu0
  %v588 = vadd.f32 %v132, %v587
  %v589 = vpop.f32.mrb[0].mxu0
  %v590 = vpop.f32.mrb[0].mxu0
  %591 = vdwg.mxu0
  %592 = vmatprep.subr.bf16.mxu0 %v348
  %593 = vmatpush1.bf16.msra.mxu0 %v347
  %594 = vmatprep.subr.bf16.mxu0 %v356
  %595 = vmatpush1.bf16.msra.mxu0 %v355
  %596 = vmatprep.subr.bf16.mxu0 %v364
  %597 = vmatpush1.bf16.msra.mxu0 %v363
  %598 = vmatprep.subr.bf16.mxu0 %v372
  %599 = vmatpush1.bf16.msra.mxu0 %v371
  %600 = vmatprep.subr.bf16.mxu0 %v380
  %601 = vmatpush1.bf16.msra.mxu0 %v379
  %602 = vmatprep.subr.bf16.mxu0 %v388
  %603 = vmatpush1.bf16.msra.mxu0 %v387
  %604 = vmatprep.subr.bf16.mxu0 %v396
  %605 = vmatpush1.bf16.msra.mxu0 %v395
  %606 = vmatprep.subr.bf16.mxu0 %v404
  %607 = vmatpush1.bf16.msra.mxu0 %v403
  %608 = vmatprep.subr.bf16.mxu0 0
  %609 = vmatpush1.bf16.msra.mxu0 0
  %610 = vmatprep.subr.bf16.mxu0 0
  %611 = vmatpush1.bf16.msra.mxu0 0
  %612 = vmatprep.subr.bf16.mxu0 0
  %613 = vmatpush1.bf16.msra.mxu0 0
  %614 = vmatprep.subr.bf16.mxu0 0
  %615 = vmatpush1.bf16.msra.mxu0 0
  %616 = vmatprep.subr.bf16.mxu0 0
  %617 = vmatpush1.bf16.msra.mxu0 0
  %618 = vmatprep.subr.bf16.mxu0 0
  %619 = vmatpush1.bf16.msra.mxu0 0
  %620 = vmatprep.subr.bf16.mxu0 0
  %621 = vmatpush1.bf16.msra.mxu0 0
  %622 = vmatprep.subr.bf16.mxu0 0
  %623 = vmatpush1.bf16.msra.mxu0 0
  %624 = vmatprep.mubr.bf16.mxu0 0
  %625 = vmatmul.mubr.bf16.gmra.mrb[0].mxu0 %v42
  %v626 = vpop.f32.mrb[0].mxu0
  %v627 = vadd.f32 %v136, %v626
  %v628 = vpop.f32.mrb[0].mxu0
  %v629 = vadd.f32 %v140, %v628
  %v630 = vpop.f32.mrb[0].mxu0
  %v631 = vpop.f32.mrb[0].mxu0
  %632 = vdwg.mxu0
  %v633 = vmax.f32 %v504, 0.0
  %v634 = vmax.f32 %v506, 0.0
  %v635 = vmax.f32 %v545, 0.0
  %v636 = vmax.f32 %v547, 0.0
  %v637 = vmax.f32 %v586, 0.0
  %v638 = vmax.f32 %v588, 0.0
  %v639 = vmax.f32 %v627, 0.0
  %v640 = vmax.f32 %v629, 0.0
  %v641 = vmax.f32 %v633, %v637
  %v642 = vmax.f32 %v634, %v638
  %v643 = vmax.f32 %v635, %v639
  %v644 = vmax.f32 %v636, %v640
  %v645 = vpack.c.bf16 %v641, %v641
  %v646 = vpack.c.bf16 %v642, %v642
  %v647 = vpack.c.bf16 %v643, %v643
  %v648 = vpack.c.bf16 %v644, %v644
  %v649 = vld [vmem:[%s3] sm:$0xff]
  %v650 = vld [vmem:[%s3 + $0x8] sm:$0xff]
  %v651 = vld [vmem:[%s3 + $0x10] sm:$0xff]
  %v652 = vld [vmem:[%s3 + $0x18] sm:$0xff]
  %v653 = vld [vmem:[%s3 + $0x20] sm:$0xff]
  %v654 = vld [vmem:[%s3 + $0x28] sm:$0xff]
  %v655 = vld [vmem:[%s3 + $0x30] sm:$0xff]
  %v656 = vld [vmem:[%s3 + $0x38] sm:$0xff]
  %v657 = vld [vmem:[%s3 + $0x40] sm:$0xff]
  %v658 = vld [vmem:[%s3 + $0x48] sm:$0xff]
  %v659 = vld [vmem:[%s3 + $0x50] sm:$0xff]
  %v660 = vld [vmem:[%s3 + $0x58] sm:$0xff]
  %v661 = vld [vmem:[%s3 + $0x60] sm:$0xff]
  %v662 = vld [vmem:[%s3 + $0x68] sm:$0xff]
  %v663 = vld [vmem:[%s3 + $0x70] sm:$0xff]
  %v664 = vld [vmem:[%s3 + $0x78] sm:$0xff]
  %v665 = vld [vmem:[%s3 + $0x80] sm:$0xff]
  %v666 = vld [vmem:[%s3 + $0x88] sm:$0xff]
  %v667 = vld [vmem:[%s3 + $0x90] sm:$0xff]
  %v668 = vld [vmem:[%s3 + $0x98] sm:$0xff]
  %v669 = vld [vmem:[%s3 + $0xa0] sm:$0xff]
  %v670 = vld [vmem:[%s3 + $0xa8] sm:$0xff]
  %v671 = vld [vmem:[%s3 + $0xb0] sm:$0xff]
  %v672 = vld [vmem:[%s3 + $0xb8] sm:$0xff]
  %v673 = vld [vmem:[%s3 + $0xc0] sm:$0xff]
  %v674 = vld [vmem:[%s3 + $0xc8] sm:$0xff]
  %v675 = vld [vmem:[%s3 + $0xd0] sm:$0xff]
  %v676 = vld [vmem:[%s3 + $0xd8] sm:$0xff]
  %v677 = vld [vmem:[%s3 + $0xe0] sm:$0xff]
  %v678 = vld [vmem:[%s3 + $0xe8] sm:$0xff]
  %v679 = vld [vmem:[%s3 + $0xf0] sm:$0xff]
  %v680 = vld [vmem:[%s3 + $0xf8] sm:$0xff]
  %v681 = vld [vmem:[%s3 + $0x100] sm:$0xff]
  %v682 = vld [vmem:[%s3 + $0x108] sm:$0xff]
  %v683 = vld [vmem:[%s3 + $0x110] sm:$0xff]
  %v684 = vld [vmem:[%s3 + $0x118] sm:$0xff]
  %v685 = vld [vmem:[%s3 + $0x120] sm:$0xff]
  %v686 = vld [vmem:[%s3 + $0x128] sm:$0xff]
  %v687 = vld [vmem:[%s3 + $0x130] sm:$0xff]
  %v688 = vld [vmem:[%s3 + $0x138] sm:$0xff]
  %v689 = vld [vmem:[%s3 + $0x140] sm:$0xff]
  %v690 = vld [vmem:[%s3 + $0x148] sm:$0xff]
  %v691 = vld [vmem:[%s3 + $0x150] sm:$0xff]
  %v692 = vld [vmem:[%s3 + $0x158] sm:$0xff]
  %v693 = vld [vmem:[%s3 + $0x160] sm:$0xff]
  %v694 = vld [vmem:[%s3 + $0x168] sm:$0xff]
  %v695 = vld [vmem:[%s3 + $0x170] sm:$0xff]
  %v696 = vld [vmem:[%s3 + $0x178] sm:$0xff]
  %v697 = vld [vmem:[%s3 + $0x180] sm:$0xff]
  %v698 = vld [vmem:[%s3 + $0x188] sm:$0xff]
  %v699 = vld [vmem:[%s3 + $0x190] sm:$0xff]
  %v700 = vld [vmem:[%s3 + $0x198] sm:$0xff]
  %v701 = vld [vmem:[%s3 + $0x1a0] sm:$0xff]
  %v702 = vld [vmem:[%s3 + $0x1a8] sm:$0xff]
  %v703 = vld [vmem:[%s3 + $0x1b0] sm:$0xff]
  %v704 = vld [vmem:[%s3 + $0x1b8] sm:$0xff]
  %v705 = vld [vmem:[%s3 + $0x1c0] sm:$0xff]
  %v706 = vld [vmem:[%s3 + $0x1c8] sm:$0xff]
  %v707 = vld [vmem:[%s3 + $0x1d0] sm:$0xff]
  %v708 = vld [vmem:[%s3 + $0x1d8] sm:$0xff]
  %v709 = vld [vmem:[%s3 + $0x1e0] sm:$0xff]
  %v710 = vld [vmem:[%s3 + $0x1e8] sm:$0xff]
  %v711 = vld [vmem:[%s3 + $0x1f0] sm:$0xff]
  %v712 = vld [vmem:[%s3 + $0x1f8] sm:$0xff]
  %v713 = vld [vmem:[%s3 + $0x200] sm:$0xff]
  %v714 = vld [vmem:[%s3 + $0x208] sm:$0xff]
  %v715 = vld [vmem:[%s3 + $0x210] sm:$0xff]
  %v716 = vld [vmem:[%s3 + $0x218] sm:$0xff]
  %v717 = vld [vmem:[%s3 + $0x220] sm:$0xff]
  %v718 = vld [vmem:[%s3 + $0x228] sm:$0xff]
  %v719 = vld [vmem:[%s3 + $0x230] sm:$0xff]
  %v720 = vld [vmem:[%s3 + $0x238] sm:$0xff]
  %v721 = vld [vmem:[%s3 + $0x240] sm:$0xff]
  %v722 = vld [vmem:[%s3 + $0x248] sm:$0xff]
  %v723 = vld [vmem:[%s3 + $0x250] sm:$0xff]
  %v724 = vld [vmem:[%s3 + $0x258] sm:$0xff]
  %v725 = vld [vmem:[%s3 + $0x260] sm:$0xff]
  %v726 = vld [vmem:[%s3 + $0x268] sm:$0xff]
  %v727 = vld [vmem:[%s3 + $0x270] sm:$0xff]
  %v728 = vld [vmem:[%s3 + $0x278] sm:$0xff]
  %v729 = vld [vmem:[%s3 + $0x280] sm:$0xff]
  %v730 = vld [vmem:[%s3 + $0x288] sm:$0xff]
  %v731 = vld [vmem:[%s3 + $0x290] sm:$0xff]
  %v732 = vld [vmem:[%s3 + $0x298] sm:$0xff]
  %v733 = vld [vmem:[%s3 + $0x2a0] sm:$0xff]
  %v734 = vld [vmem:[%s3 + $0x2a8] sm:$0xff]
  %v735 = vld [vmem:[%s3 + $0x2b0] sm:$0xff]
  %v736 = vld [vmem:[%s3 + $0x2b8] sm:$0xff]
  %v737 = vld [vmem:[%s3 + $0x2c0] sm:$0xff]
  %v738 = vld [vmem:[%s3 + $0x2c8] sm:$0xff]
  %v739 = vld [vmem:[%s3 + $0x2d0] sm:$0xff]
  %v740 = vld [vmem:[%s3 + $0x2d8] sm:$0xff]
  %v741 = vld [vmem:[%s3 + $0x2e0] sm:$0xff]
  %v742 = vld [vmem:[%s3 + $0x2e8] sm:$0xff]
  %v743 = vld [vmem:[%s3 + $0x2f0] sm:$0xff]
  %v744 = vld [vmem:[%s3 + $0x2f8] sm:$0xff]
  %v745 = vld [vmem:[%s3 + $0x300] sm:$0xff]
  %v746 = vld [vmem:[%s3 + $0x308] sm:$0xff]
  %v747 = vld [vmem:[%s3 + $0x310] sm:$0xff]
  %v748 = vld [vmem:[%s3 + $0x318] sm:$0xff]
  %v749 = vld [vmem:[%s3 + $0x320] sm:$0xff]
  %v750 = vld [vmem:[%s3 + $0x328] sm:$0xff]
  %v751 = vld [vmem:[%s3 + $0x330] sm:$0xff]
  %v752 = vld [vmem:[%s3 + $0x338] sm:$0xff]
  %v753 = vld [vmem:[%s3 + $0x340] sm:$0xff]
  %v754 = vld [vmem:[%s3 + $0x348] sm:$0xff]
  %v755 = vld [vmem:[%s3 + $0x350] sm:$0xff]
  %v756 = vld [vmem:[%s3 + $0x358] sm:$0xff]
  %v757 = vld [vmem:[%s3 + $0x360] sm:$0xff]
  %v758 = vld [vmem:[%s3 + $0x368] sm:$0xff]
  %v759 = vld [vmem:[%s3 + $0x370] sm:$0xff]
  %v760 = vld [vmem:[%s3 + $0x378] sm:$0xff]
  %v761 = vld [vmem:[%s3 + $0x380] sm:$0xff]
  %v762 = vld [vmem:[%s3 + $0x388] sm:$0xff]
  %v763 = vld [vmem:[%s3 + $0x390] sm:$0xff]
  %v764 = vld [vmem:[%s3 + $0x398] sm:$0xff]
  %v765 = vld [vmem:[%s3 + $0x3a0] sm:$0xff]
  %v766 = vld [vmem:[%s3 + $0x3a8] sm:$0xff]
  %v767 = vld [vmem:[%s3 + $0x3b0] sm:$0xff]
  %v768 = vld [vmem:[%s3 + $0x3b8] sm:$0xff]
  %v769 = vld [vmem:[%s3 + $0x3c0] sm:$0xff]
  %v770 = vld [vmem:[%s3 + $0x3c8] sm:$0xff]
  %v771 = vld [vmem:[%s3 + $0x3d0] sm:$0xff]
  %v772 = vld [vmem:[%s3 + $0x3d8] sm:$0xff]
  %v773 = vld [vmem:[%s3 + $0x3e0] sm:$0xff]
  %v774 = vld [vmem:[%s3 + $0x3e8] sm:$0xff]
  %v775 = vld [vmem:[%s3 + $0x3f0] sm:$0xff]
  %v776 = vld [vmem:[%s3 + $0x3f8] sm:$0xff]
  %v777 = vld [vmem:[%s4] sm:$0xf]
  %v779 = vlaneseq
  %v780 = vshrl.u32 %v779, 7
  %v781 = vsub.s32 0, %v780
  %v782 = vrot.slane %v777, %v781
  %v783 = vlaneseq
  %v784 = vshrl.u32 %v783, 7
  %v785 = vsub.s32 1, %v784
  %v786 = vrot.slane %v777, %v785
  %v787 = vlaneseq
  %v788 = vshrl.u32 %v787, 7
  %v789 = vsub.s32 2, %v788
  %v790 = vrot.slane %v777, %v789
  %v791 = vlaneseq
  %v792 = vshrl.u32 %v791, 7
  %v793 = vsub.s32 3, %v792
  %v794 = vrot.slane %v777, %v793
  %v927 = vunpack.c.l.b16 %v649
  %v928 = vunpack.c.h.b16 %v649
  %v929 = vunpack.c.l.b16 %v650
  %v930 = vunpack.c.h.b16 %v650
  %v931 = vunpack.c.l.b16 %v651
  %v932 = vunpack.c.h.b16 %v651
  %v933 = vunpack.c.l.b16 %v652
  %v934 = vunpack.c.h.b16 %v652
  %v935 = vunpack.c.l.b16 %v653
  %v936 = vunpack.c.h.b16 %v653
  %v937 = vunpack.c.l.b16 %v654
  %v938 = vunpack.c.h.b16 %v654
  %v939 = vunpack.c.l.b16 %v655
  %v940 = vunpack.c.h.b16 %v655
  %v941 = vunpack.c.l.b16 %v656
  %v942 = vunpack.c.h.b16 %v656
  %v943 = vunpack.c.l.b16 %v657
  %v944 = vunpack.c.h.b16 %v657
  %v945 = vunpack.c.l.b16 %v658
  %v946 = vunpack.c.h.b16 %v658
  %v947 = vunpack.c.l.b16 %v659
  %v948 = vunpack.c.h.b16 %v659
  %v949 = vunpack.c.l.b16 %v660
  %v950 = vunpack.c.h.b16 %v660
  %v951 = vunpack.c.l.b16 %v661
  %v952 = vunpack.c.h.b16 %v661
  %v953 = vunpack.c.l.b16 %v662
  %v954 = vunpack.c.h.b16 %v662
  %v955 = vunpack.c.l.b16 %v663
  %v956 = vunpack.c.h.b16 %v663
  %v957 = vunpack.c.l.b16 %v664
  %v958 = vunpack.c.h.b16 %v664
  %v959 = vunpack.c.l.b16 %v665
  %v960 = vunpack.c.h.b16 %v665
  %v961 = vunpack.c.l.b16 %v666
  %v962 = vunpack.c.h.b16 %v666
  %v963 = vunpack.c.l.b16 %v667
  %v964 = vunpack.c.h.b16 %v667
  %v965 = vunpack.c.l.b16 %v668
  %v966 = vunpack.c.h.b16 %v668
  %v967 = vunpack.c.l.b16 %v669
  %v968 = vunpack.c.h.b16 %v669
  %v969 = vunpack.c.l.b16 %v670
  %v970 = vunpack.c.h.b16 %v670
  %v971 = vunpack.c.l.b16 %v671
  %v972 = vunpack.c.h.b16 %v671
  %v973 = vunpack.c.l.b16 %v672
  %v974 = vunpack.c.h.b16 %v672
  %v975 = vunpack.c.l.b16 %v673
  %v976 = vunpack.c.h.b16 %v673
  %v977 = vunpack.c.l.b16 %v674
  %v978 = vunpack.c.h.b16 %v674
  %v979 = vunpack.c.l.b16 %v675
  %v980 = vunpack.c.h.b16 %v675
  %v981 = vunpack.c.l.b16 %v676
  %v982 = vunpack.c.h.b16 %v676
  %v983 = vunpack.c.l.b16 %v677
  %v984 = vunpack.c.h.b16 %v677
  %v985 = vunpack.c.l.b16 %v678
  %v986 = vunpack.c.h.b16 %v678
  %v987 = vunpack.c.l.b16 %v679
  %v988 = vunpack.c.h.b16 %v679
  %v989 = vunpack.c.l.b16 %v680
  %v990 = vunpack.c.h.b16 %v680
  %v991 = vunpack.c.l.b16 %v681
  %v992 = vunpack.c.h.b16 %v681
  %v993 = vunpack.c.l.b16 %v682
  %v994 = vunpack.c.h.b16 %v682
  %v995 = vunpack.c.l.b16 %v683
  %v996 = vunpack.c.h.b16 %v683
  %v997 = vunpack.c.l.b16 %v684
  %v998 = vunpack.c.h.b16 %v684
  %v999 = vunpack.c.l.b16 %v685
  %v1000 = vunpack.c.h.b16 %v685
  %v1001 = vunpack.c.l.b16 %v686
  %v1002 = vunpack.c.h.b16 %v686
  %v1003 = vunpack.c.l.b16 %v687
  %v1004 = vunpack.c.h.b16 %v687
  %v1005 = vunpack.c.l.b16 %v688
  %v1006 = vunpack.c.h.b16 %v688
  %v1007 = vunpack.c.l.b16 %v689
  %v1008 = vunpack.c.h.b16 %v689
  %v1009 = vunpack.c.l.b16 %v690
  %v1010 = vunpack.c.h.b16 %v690
  %v1011 = vunpack.c.l.b16 %v691
  %v1012 = vunpack.c.h.b16 %v691
  %v1013 = vunpack.c.l.b16 %v692
  %v1014 = vunpack.c.h.b16 %v692
  %v1015 = vunpack.c.l.b16 %v693
  %v1016 = vunpack.c.h.b16 %v693
  %v1017 = vunpack.c.l.b16 %v694
  %v1018 = vunpack.c.h.b16 %v694
  %v1019 = vunpack.c.l.b16 %v695
  %v1020 = vunpack.c.h.b16 %v695
  %v1021 = vunpack.c.l.b16 %v696
  %v1022 = vunpack.c.h.b16 %v696
  %v1023 = vunpack.c.l.b16 %v697
  %v1024 = vunpack.c.h.b16 %v697
  %v1025 = vunpack.c.l.b16 %v698
  %v1026 = vunpack.c.h.b16 %v698
  %v1027 = vunpack.c.l.b16 %v699
  %v1028 = vunpack.c.h.b16 %v699
  %v1029 = vunpack.c.l.b16 %v700
  %v1030 = vunpack.c.h.b16 %v700
  %v1031 = vunpack.c.l.b16 %v701
  %v1032 = vunpack.c.h.b16 %v701
  %v1033 = vunpack.c.l.b16 %v702
  %v1034 = vunpack.c.h.b16 %v702
  %v1035 = vunpack.c.l.b16 %v703
  %v1036 = vunpack.c.h.b16 %v703
  %v1037 = vunpack.c.l.b16 %v704
  %v1038 = vunpack.c.h.b16 %v704
  %v1039 = vunpack.c.l.b16 %v705
  %v1040 = vunpack.c.h.b16 %v705
  %v1041 = vunpack.c.l.b16 %v706
  %v1042 = vunpack.c.h.b16 %v706
  %v1043 = vunpack.c.l.b16 %v707
  %v1044 = vunpack.c.h.b16 %v707
  %v1045 = vunpack.c.l.b16 %v708
  %v1046 = vunpack.c.h.b16 %v708
  %v1047 = vunpack.c.l.b16 %v709
  %v1048 = vunpack.c.h.b16 %v709
  %v1049 = vunpack.c.l.b16 %v710
  %v1050 = vunpack.c.h.b16 %v710
  %v1051 = vunpack.c.l.b16 %v711
  %v1052 = vunpack.c.h.b16 %v711
  %v1053 = vunpack.c.l.b16 %v712
  %v1054 = vunpack.c.h.b16 %v712
  %v1055 = vunpack.c.l.b16 %v713
  %v1056 = vunpack.c.h.b16 %v713
  %v1057 = vunpack.c.l.b16 %v714
  %v1058 = vunpack.c.h.b16 %v714
  %v1059 = vunpack.c.l.b16 %v715
  %v1060 = vunpack.c.h.b16 %v715
  %v1061 = vunpack.c.l.b16 %v716
  %v1062 = vunpack.c.h.b16 %v716
  %v1063 = vunpack.c.l.b16 %v717
  %v1064 = vunpack.c.h.b16 %v717
  %v1065 = vunpack.c.l.b16 %v718
  %v1066 = vunpack.c.h.b16 %v718
  %v1067 = vunpack.c.l.b16 %v719
  %v1068 = vunpack.c.h.b16 %v719
  %v1069 = vunpack.c.l.b16 %v720
  %v1070 = vunpack.c.h.b16 %v720
  %v1071 = vunpack.c.l.b16 %v721
  %v1072 = vunpack.c.h.b16 %v721
  %v1073 = vunpack.c.l.b16 %v722
  %v1074 = vunpack.c.h.b16 %v722
  %v1075 = vunpack.c.l.b16 %v723
  %v1076 = vunpack.c.h.b16 %v723
  %v1077 = vunpack.c.l.b16 %v724
  %v1078 = vunpack.c.h.b16 %v724
  %v1079 = vunpack.c.l.b16 %v725
  %v1080 = vunpack.c.h.b16 %v725
  %v1081 = vunpack.c.l.b16 %v726
  %v1082 = vunpack.c.h.b16 %v726
  %v1083 = vunpack.c.l.b16 %v727
  %v1084 = vunpack.c.h.b16 %v727
  %v1085 = vunpack.c.l.b16 %v728
  %v1086 = vunpack.c.h.b16 %v728
  %v1087 = vunpack.c.l.b16 %v729
  %v1088 = vunpack.c.h.b16 %v729
  %v1089 = vunpack.c.l.b16 %v730
  %v1090 = vunpack.c.h.b16 %v730
  %v1091 = vunpack.c.l.b16 %v731
  %v1092 = vunpack.c.h.b16 %v731
  %v1093 = vunpack.c.l.b16 %v732
  %v1094 = vunpack.c.h.b16 %v732
  %v1095 = vunpack.c.l.b16 %v733
  %v1096 = vunpack.c.h.b16 %v733
  %v1097 = vunpack.c.l.b16 %v734
  %v1098 = vunpack.c.h.b16 %v734
  %v1099 = vunpack.c.l.b16 %v735
  %v1100 = vunpack.c.h.b16 %v735
  %v1101 = vunpack.c.l.b16 %v736
  %v1102 = vunpack.c.h.b16 %v736
  %v1103 = vunpack.c.l.b16 %v737
  %v1104 = vunpack.c.h.b16 %v737
  %v1105 = vunpack.c.l.b16 %v738
  %v1106 = vunpack.c.h.b16 %v738
  %v1107 = vunpack.c.l.b16 %v739
  %v1108 = vunpack.c.h.b16 %v739
  %v1109 = vunpack.c.l.b16 %v740
  %v1110 = vunpack.c.h.b16 %v740
  %v1111 = vunpack.c.l.b16 %v741
  %v1112 = vunpack.c.h.b16 %v741
  %v1113 = vunpack.c.l.b16 %v742
  %v1114 = vunpack.c.h.b16 %v742
  %v1115 = vunpack.c.l.b16 %v743
  %v1116 = vunpack.c.h.b16 %v743
  %v1117 = vunpack.c.l.b16 %v744
  %v1118 = vunpack.c.h.b16 %v744
  %v1119 = vunpack.c.l.b16 %v745
  %v1120 = vunpack.c.h.b16 %v745
  %v1121 = vunpack.c.l.b16 %v746
  %v1122 = vunpack.c.h.b16 %v746
  %v1123 = vunpack.c.l.b16 %v747
  %v1124 = vunpack.c.h.b16 %v747
  %v1125 = vunpack.c.l.b16 %v748
  %v1126 = vunpack.c.h.b16 %v748
  %v1127 = vunpack.c.l.b16 %v749
  %v1128 = vunpack.c.h.b16 %v749
  %v1129 = vunpack.c.l.b16 %v750
  %v1130 = vunpack.c.h.b16 %v750
  %v1131 = vunpack.c.l.b16 %v751
  %v1132 = vunpack.c.h.b16 %v751
  %v1133 = vunpack.c.l.b16 %v752
  %v1134 = vunpack.c.h.b16 %v752
  %v1135 = vunpack.c.l.b16 %v753
  %v1136 = vunpack.c.h.b16 %v753
  %v1137 = vunpack.c.l.b16 %v754
  %v1138 = vunpack.c.h.b16 %v754
  %v1139 = vunpack.c.l.b16 %v755
  %v1140 = vunpack.c.h.b16 %v755
  %v1141 = vunpack.c.l.b16 %v756
  %v1142 = vunpack.c.h.b16 %v756
  %v1143 = vunpack.c.l.b16 %v757
  %v1144 = vunpack.c.h.b16 %v757
  %v1145 = vunpack.c.l.b16 %v758
  %v1146 = vunpack.c.h.b16 %v758
  %v1147 = vunpack.c.l.b16 %v759
  %v1148 = vunpack.c.h.b16 %v759
  %v1149 = vunpack.c.l.b16 %v760
  %v1150 = vunpack.c.h.b16 %v760
  %v1151 = vunpack.c.l.b16 %v761
  %v1152 = vunpack.c.h.b16 %v761
  %v1153 = vunpack.c.l.b16 %v762
  %v1154 = vunpack.c.h.b16 %v762
  %v1155 = vunpack.c.l.b16 %v763
  %v1156 = vunpack.c.h.b16 %v763
  %v1157 = vunpack.c.l.b16 %v764
  %v1158 = vunpack.c.h.b16 %v764
  %v1159 = vunpack.c.l.b16 %v765
  %v1160 = vunpack.c.h.b16 %v765
  %v1161 = vunpack.c.l.b16 %v766
  %v1162 = vunpack.c.h.b16 %v766
  %v1163 = vunpack.c.l.b16 %v767
  %v1164 = vunpack.c.h.b16 %v767
  %v1165 = vunpack.c.l.b16 %v768
  %v1166 = vunpack.c.h.b16 %v768
  %v1167 = vunpack.c.l.b16 %v769
  %v1168 = vunpack.c.h.b16 %v769
  %v1169 = vunpack.c.l.b16 %v770
  %v1170 = vunpack.c.h.b16 %v770
  %v1171 = vunpack.c.l.b16 %v771
  %v1172 = vunpack.c.h.b16 %v771
  %v1173 = vunpack.c.l.b16 %v772
  %v1174 = vunpack.c.h.b16 %v772
  %v1175 = vunpack.c.l.b16 %v773
  %v1176 = vunpack.c.h.b16 %v773
  %v1177 = vunpack.c.l.b16 %v774
  %v1178 = vunpack.c.h.b16 %v774
  %v1179 = vunpack.c.l.b16 %v775
  %v1180 = vunpack.c.h.b16 %v775
  %v1181 = vunpack.c.l.b16 %v776
  %v1182 = vunpack.c.h.b16 %v776
  %v1183 = vpack.c.b16 %v931, %v927
  %v1184 = vpack.c.b16 %v932, %v928
  %v1185 = vpack.c.b16 %v933, %v929
  %v1186 = vpack.c.b16 %v934, %v930
  %v1187 = vpack.c.b16 %v939, %v935
  %v1188 = vpack.c.b16 %v940, %v936
  %v1189 = vpack.c.b16 %v941, %v937
  %v1190 = vpack.c.b16 %v942, %v938
  %v1191 = vpack.c.b16 %v947, %v943
  %v1192 = vpack.c.b16 %v948, %v944
  %v1193 = vpack.c.b16 %v949, %v945
  %v1194 = vpack.c.b16 %v950, %v946
  %v1195 = vpack.c.b16 %v955, %v951
  %v1196 = vpack.c.b16 %v956, %v952
  %v1197 = vpack.c.b16 %v957, %v953
  %v1198 = vpack.c.b16 %v958, %v954
  %v1199 = vpack.c.b16 %v963, %v959
  %v1200 = vpack.c.b16 %v964, %v960
  %v1201 = vpack.c.b16 %v965, %v961
  %v1202 = vpack.c.b16 %v966, %v962
  %v1203 = vpack.c.b16 %v971, %v967
  %v1204 = vpack.c.b16 %v972, %v968
  %v1205 = vpack.c.b16 %v973, %v969
  %v1206 = vpack.c.b16 %v974, %v970
  %v1207 = vpack.c.b16 %v979, %v975
  %v1208 = vpack.c.b16 %v980, %v976
  %v1209 = vpack.c.b16 %v981, %v977
  %v1210 = vpack.c.b16 %v982, %v978
  %v1211 = vpack.c.b16 %v987, %v983
  %v1212 = vpack.c.b16 %v988, %v984
  %v1213 = vpack.c.b16 %v989, %v985
  %v1214 = vpack.c.b16 %v990, %v986
  %v1215 = vpack.c.b16 %v995, %v991
  %v1216 = vpack.c.b16 %v996, %v992
  %v1217 = vpack.c.b16 %v997, %v993
  %v1218 = vpack.c.b16 %v998, %v994
  %v1219 = vpack.c.b16 %v1003, %v999
  %v1220 = vpack.c.b16 %v1004, %v1000
  %v1221 = vpack.c.b16 %v1005, %v1001
  %v1222 = vpack.c.b16 %v1006, %v1002
  %v1223 = vpack.c.b16 %v1011, %v1007
  %v1224 = vpack.c.b16 %v1012, %v1008
  %v1225 = vpack.c.b16 %v1013, %v1009
  %v1226 = vpack.c.b16 %v1014, %v1010
  %v1227 = vpack.c.b16 %v1019, %v1015
  %v1228 = vpack.c.b16 %v1020, %v1016
  %v1229 = vpack.c.b16 %v1021, %v1017
  %v1230 = vpack.c.b16 %v1022, %v1018
  %v1231 = vpack.c.b16 %v1027, %v1023
  %v1232 = vpack.c.b16 %v1028, %v1024
  %v1233 = vpack.c.b16 %v1029, %v1025
  %v1234 = vpack.c.b16 %v1030, %v1026
  %v1235 = vpack.c.b16 %v1035, %v1031
  %v1236 = vpack.c.b16 %v1036, %v1032
  %v1237 = vpack.c.b16 %v1037, %v1033
  %v1238 = vpack.c.b16 %v1038, %v1034
  %v1239 = vpack.c.b16 %v1043, %v1039
  %v1240 = vpack.c.b16 %v1044, %v1040
  %v1241 = vpack.c.b16 %v1045, %v1041
  %v1242 = vpack.c.b16 %v1046, %v1042
  %v1243 = vpack.c.b16 %v1051, %v1047
  %v1244 = vpack.c.b16 %v1052, %v1048
  %v1245 = vpack.c.b16 %v1053, %v1049
  %v1246 = vpack.c.b16 %v1054, %v1050
  %v1247 = vpack.c.b16 %v1059, %v1055
  %v1248 = vpack.c.b16 %v1060, %v1056
  %v1249 = vpack.c.b16 %v1061, %v1057
  %v1250 = vpack.c.b16 %v1062, %v1058
  %v1251 = vpack.c.b16 %v1067, %v1063
  %v1252 = vpack.c.b16 %v1068, %v1064
  %v1253 = vpack.c.b16 %v1069, %v1065
  %v1254 = vpack.c.b16 %v1070, %v1066
  %v1255 = vpack.c.b16 %v1075, %v1071
  %v1256 = vpack.c.b16 %v1076, %v1072
  %v1257 = vpack.c.b16 %v1077, %v1073
  %v1258 = vpack.c.b16 %v1078, %v1074
  %v1259 = vpack.c.b16 %v1083, %v1079
  %v1260 = vpack.c.b16 %v1084, %v1080
  %v1261 = vpack.c.b16 %v1085, %v1081
  %v1262 = vpack.c.b16 %v1086, %v1082
  %v1263 = vpack.c.b16 %v1091, %v1087
  %v1264 = vpack.c.b16 %v1092, %v1088
  %v1265 = vpack.c.b16 %v1093, %v1089
  %v1266 = vpack.c.b16 %v1094, %v1090
  %v1267 = vpack.c.b16 %v1099, %v1095
  %v1268 = vpack.c.b16 %v1100, %v1096
  %v1269 = vpack.c.b16 %v1101, %v1097
  %v1270 = vpack.c.b16 %v1102, %v1098
  %v1271 = vpack.c.b16 %v1107, %v1103
  %v1272 = vpack.c.b16 %v1108, %v1104
  %v1273 = vpack.c.b16 %v1109, %v1105
  %v1274 = vpack.c.b16 %v1110, %v1106
  %v1275 = vpack.c.b16 %v1115, %v1111
  %v1276 = vpack.c.b16 %v1116, %v1112
  %v1277 = vpack.c.b16 %v1117, %v1113
  %v1278 = vpack.c.b16 %v1118, %v1114
  %v1279 = vpack.c.b16 %v1123, %v1119
  %v1280 = vpack.c.b16 %v1124, %v1120
  %v1281 = vpack.c.b16 %v1125, %v1121
  %v1282 = vpack.c.b16 %v1126, %v1122
  %v1283 = vpack.c.b16 %v1131, %v1127
  %v1284 = vpack.c.b16 %v1132, %v1128
  %v1285 = vpack.c.b16 %v1133, %v1129
  %v1286 = vpack.c.b16 %v1134, %v1130
  %v1287 = vpack.c.b16 %v1139, %v1135
  %v1288 = vpack.c.b16 %v1140, %v1136
  %v1289 = vpack.c.b16 %v1141, %v1137
  %v1290 = vpack.c.b16 %v1142, %v1138
  %v1291 = vpack.c.b16 %v1147, %v1143
  %v1292 = vpack.c.b16 %v1148, %v1144
  %v1293 = vpack.c.b16 %v1149, %v1145
  %v1294 = vpack.c.b16 %v1150, %v1146
  %v1295 = vpack.c.b16 %v1155, %v1151
  %v1296 = vpack.c.b16 %v1156, %v1152
  %v1297 = vpack.c.b16 %v1157, %v1153
  %v1298 = vpack.c.b16 %v1158, %v1154
  %v1299 = vpack.c.b16 %v1163, %v1159
  %v1300 = vpack.c.b16 %v1164, %v1160
  %v1301 = vpack.c.b16 %v1165, %v1161
  %v1302 = vpack.c.b16 %v1166, %v1162
  %v1303 = vpack.c.b16 %v1171, %v1167
  %v1304 = vpack.c.b16 %v1172, %v1168
  %v1305 = vpack.c.b16 %v1173, %v1169
  %v1306 = vpack.c.b16 %v1174, %v1170
  %v1307 = vpack.c.b16 %v1179, %v1175
  %v1308 = vpack.c.b16 %v1180, %v1176
  %v1309 = vpack.c.b16 %v1181, %v1177
  %v1310 = vpack.c.b16 %v1182, %v1178
  %1439 = vmatprep.subr.bf16.mxu0 %v1184
  %1440 = vmatpush1.bf16.msra.mxu0 %v1183
  %1441 = vmatprep.subr.bf16.mxu0 %v1188
  %1442 = vmatpush1.bf16.msra.mxu0 %v1187
  %1443 = vmatprep.subr.bf16.mxu0 %v1192
  %1444 = vmatpush1.bf16.msra.mxu0 %v1191
  %1445 = vmatprep.subr.bf16.mxu0 %v1196
  %1446 = vmatpush1.bf16.msra.mxu0 %v1195
  %1447 = vmatprep.subr.bf16.mxu0 %v1200
  %1448 = vmatpush1.bf16.msra.mxu0 %v1199
  %1449 = vmatprep.subr.bf16.mxu0 %v1204
  %1450 = vmatpush1.bf16.msra.mxu0 %v1203
  %1451 = vmatprep.subr.bf16.mxu0 %v1208
  %1452 = vmatpush1.bf16.msra.mxu0 %v1207
  %1453 = vmatprep.subr.bf16.mxu0 %v1212
  %1454 = vmatpush1.bf16.msra.mxu0 %v1211
  %1455 = vmatprep.subr.bf16.mxu0 %v1216
  %1456 = vmatpush1.bf16.msra.mxu0 %v1215
  %1457 = vmatprep.subr.bf16.mxu0 %v1220
  %1458 = vmatpush1.bf16.msra.mxu0 %v1219
  %1459 = vmatprep.subr.bf16.mxu0 %v1224
  %1460 = vmatpush1.bf16.msra.mxu0 %v1223
  %1461 = vmatprep.subr.bf16.mxu0 %v1228
  %1462 = vmatpush1.bf16.msra.mxu0 %v1227
  %1463 = vmatprep.subr.bf16.mxu0 %v1232
  %1464 = vmatpush1.bf16.msra.mxu0 %v1231
  %1465 = vmatprep.subr.bf16.mxu0 %v1236
  %1466 = vmatpush1.bf16.msra.mxu0 %v1235
  %1467 = vmatprep.subr.bf16.mxu0 %v1240
  %1468 = vmatpush1.bf16.msra.mxu0 %v1239
  %1469 = vmatprep.subr.bf16.mxu0 %v1244
  %1470 = vmatpush1.bf16.msra.mxu0 %v1243
  %1471 = vmatprep.mubr.bf16.mxu0 %v646
  %1472 = vmatmul.mubr.bf16.gmra.mrb[0].mxu0 %v645
  %v1473 = vpop.f32.mrb[0].mxu0
  %v1474 = vadd.f32 %v782, %v1473
  %v1475 = vpop.f32.mrb[0].mxu0
  %v1476 = vadd.f32 %v786, %v1475
  %v1477 = vpop.f32.mrb[0].mxu0
  %v1478 = vpop.f32.mrb[0].mxu0
  %1479 = vdwg.mxu0
  %1480 = vmatprep.subr.bf16.mxu0 %v1248
  %1481 = vmatpush1.bf16.msra.mxu0 %v1247
  %1482 = vmatprep.subr.bf16.mxu0 %v1252
  %1483 = vmatpush1.bf16.msra.mxu0 %v1251
  %1484 = vmatprep.subr.bf16.mxu0 %v1256
  %1485 = vmatpush1.bf16.msra.mxu0 %v1255
  %1486 = vmatprep.subr.bf16.mxu0 %v1260
  %1487 = vmatpush1.bf16.msra.mxu0 %v1259
  %1488 = vmatprep.subr.bf16.mxu0 %v1264
  %1489 = vmatpush1.bf16.msra.mxu0 %v1263
  %1490 = vmatprep.subr.bf16.mxu0 %v1268
  %1491 = vmatpush1.bf16.msra.mxu0 %v1267
  %1492 = vmatprep.subr.bf16.mxu0 %v1272
  %1493 = vmatpush1.bf16.msra.mxu0 %v1271
  %1494 = vmatprep.subr.bf16.mxu0 %v1276
  %1495 = vmatpush1.bf16.msra.mxu0 %v1275
  %1496 = vmatprep.subr.bf16.mxu0 %v1280
  %1497 = vmatpush1.bf16.msra.mxu0 %v1279
  %1498 = vmatprep.subr.bf16.mxu0 %v1284
  %1499 = vmatpush1.bf16.msra.mxu0 %v1283
  %1500 = vmatprep.subr.bf16.mxu0 %v1288
  %1501 = vmatpush1.bf16.msra.mxu0 %v1287
  %1502 = vmatprep.subr.bf16.mxu0 %v1292
  %1503 = vmatpush1.bf16.msra.mxu0 %v1291
  %1504 = vmatprep.subr.bf16.mxu0 %v1296
  %1505 = vmatpush1.bf16.msra.mxu0 %v1295
  %1506 = vmatprep.subr.bf16.mxu0 %v1300
  %1507 = vmatpush1.bf16.msra.mxu0 %v1299
  %1508 = vmatprep.subr.bf16.mxu0 %v1304
  %1509 = vmatpush1.bf16.msra.mxu0 %v1303
  %1510 = vmatprep.subr.bf16.mxu0 %v1308
  %1511 = vmatpush1.bf16.msra.mxu0 %v1307
  %1512 = vmatprep.mubr.bf16.mxu0 %v648
  %1513 = vmatmul.mubr.bf16.gmra.mrb[0].mxu0 %v647
  %v1514 = vpop.f32.mrb[0].mxu0
  %v1515 = vadd.f32 %v1474, %v1514
  %v1516 = vpop.f32.mrb[0].mxu0
  %v1517 = vadd.f32 %v1476, %v1516
  %v1518 = vpop.f32.mrb[0].mxu0
  %v1519 = vpop.f32.mrb[0].mxu0
  %1520 = vdwg.mxu0
  %1521 = vmatprep.subr.bf16.mxu0 %v1186
  %1522 = vmatpush1.bf16.msra.mxu0 %v1185
  %1523 = vmatprep.subr.bf16.mxu0 %v1190
  %1524 = vmatpush1.bf16.msra.mxu0 %v1189
  %1525 = vmatprep.subr.bf16.mxu0 %v1194
  %1526 = vmatpush1.bf16.msra.mxu0 %v1193
  %1527 = vmatprep.subr.bf16.mxu0 %v1198
  %1528 = vmatpush1.bf16.msra.mxu0 %v1197
  %1529 = vmatprep.subr.bf16.mxu0 %v1202
  %1530 = vmatpush1.bf16.msra.mxu0 %v1201
  %1531 = vmatprep.subr.bf16.mxu0 %v1206
  %1532 = vmatpush1.bf16.msra.mxu0 %v1205
  %1533 = vmatprep.subr.bf16.mxu0 %v1210
  %1534 = vmatpush1.bf16.msra.mxu0 %v1209
  %1535 = vmatprep.subr.bf16.mxu0 %v1214
  %1536 = vmatpush1.bf16.msra.mxu0 %v1213
  %1537 = vmatprep.subr.bf16.mxu0 %v1218
  %1538 = vmatpush1.bf16.msra.mxu0 %v1217
  %1539 = vmatprep.subr.bf16.mxu0 %v1222
  %1540 = vmatpush1.bf16.msra.mxu0 %v1221
  %1541 = vmatprep.subr.bf16.mxu0 %v1226
  %1542 = vmatpush1.bf16.msra.mxu0 %v1225
  %1543 = vmatprep.subr.bf16.mxu0 %v1230
  %1544 = vmatpush1.bf16.msra.mxu0 %v1229
  %1545 = vmatprep.subr.bf16.mxu0 %v1234
  %1546 = vmatpush1.bf16.msra.mxu0 %v1233
  %1547 = vmatprep.subr.bf16.mxu0 %v1238
  %1548 = vmatpush1.bf16.msra.mxu0 %v1237
  %1549 = vmatprep.subr.bf16.mxu0 %v1242
  %1550 = vmatpush1.bf16.msra.mxu0 %v1241
  %1551 = vmatprep.subr.bf16.mxu0 %v1246
  %1552 = vmatpush1.bf16.msra.mxu0 %v1245
  %1553 = vmatprep.mubr.bf16.mxu0 %v646
  %1554 = vmatmul.mubr.bf16.gmra.mrb[0].mxu0 %v645
  %v1555 = vpop.f32.mrb[0].mxu0
  %v1556 = vadd.f32 %v790, %v1555
  %v1557 = vpop.f32.mrb[0].mxu0
  %v1558 = vadd.f32 %v794, %v1557
  %v1559 = vpop.f32.mrb[0].mxu0
  %v1560 = vpop.f32.mrb[0].mxu0
  %1561 = vdwg.mxu0
  %1562 = vmatprep.subr.bf16.mxu0 %v1250
  %1563 = vmatpush1.bf16.msra.mxu0 %v1249
  %1564 = vmatprep.subr.bf16.mxu0 %v1254
  %1565 = vmatpush1.bf16.msra.mxu0 %v1253
  %1566 = vmatprep.subr.bf16.mxu0 %v1258
  %1567 = vmatpush1.bf16.msra.mxu0 %v1257
  %1568 = vmatprep.subr.bf16.mxu0 %v1262
  %1569 = vmatpush1.bf16.msra.mxu0 %v1261
  %1570 = vmatprep.subr.bf16.mxu0 %v1266
  %1571 = vmatpush1.bf16.msra.mxu0 %v1265
  %1572 = vmatprep.subr.bf16.mxu0 %v1270
  %1573 = vmatpush1.bf16.msra.mxu0 %v1269
  %1574 = vmatprep.subr.bf16.mxu0 %v1274
  %1575 = vmatpush1.bf16.msra.mxu0 %v1273
  %1576 = vmatprep.subr.bf16.mxu0 %v1278
  %1577 = vmatpush1.bf16.msra.mxu0 %v1277
  %1578 = vmatprep.subr.bf16.mxu0 %v1282
  %1579 = vmatpush1.bf16.msra.mxu0 %v1281
  %1580 = vmatprep.subr.bf16.mxu0 %v1286
  %1581 = vmatpush1.bf16.msra.mxu0 %v1285
  %1582 = vmatprep.subr.bf16.mxu0 %v1290
  %1583 = vmatpush1.bf16.msra.mxu0 %v1289
  %1584 = vmatprep.subr.bf16.mxu0 %v1294
  %1585 = vmatpush1.bf16.msra.mxu0 %v1293
  %1586 = vmatprep.subr.bf16.mxu0 %v1298
  %1587 = vmatpush1.bf16.msra.mxu0 %v1297
  %1588 = vmatprep.subr.bf16.mxu0 %v1302
  %1589 = vmatpush1.bf16.msra.mxu0 %v1301
  %1590 = vmatprep.subr.bf16.mxu0 %v1306
  %1591 = vmatpush1.bf16.msra.mxu0 %v1305
  %1592 = vmatprep.subr.bf16.mxu0 %v1310
  %1593 = vmatpush1.bf16.msra.mxu0 %v1309
  %1594 = vmatprep.mubr.bf16.mxu0 %v648
  %1595 = vmatmul.mubr.bf16.gmra.mrb[0].mxu0 %v647
  %v1596 = vpop.f32.mrb[0].mxu0
  %v1597 = vadd.f32 %v1556, %v1596
  %v1598 = vpop.f32.mrb[0].mxu0
  %v1599 = vadd.f32 %v1558, %v1598
  %v1600 = vpop.f32.mrb[0].mxu0
  %v1601 = vpop.f32.mrb[0].mxu0
  %1602 = vdwg.mxu0
  %v1603 = vmax.f32 %v1515, 0.0
  %v1604 = vmax.f32 %v1517, 0.0
  %v1605 = vmax.f32 %v1597, 0.0
  %v1606 = vmax.f32 %v1599, 0.0
  %v1607 = vmax.f32 %v1603, %v1605
  %v1608 = vmax.f32 %v1604, %v1606
  %v1609 = vpack.c.bf16 %v1607, %v1607
  %v1610 = vpack.c.bf16 %v1608, %v1608
  %v1611 = vld [vmem:[%s5] sm:$0xff]
  %v1612 = vld [vmem:[%s5 + $0x8] sm:$0xff]
  %v1613 = vld [vmem:[%s5 + $0x10] sm:$0xff]
  %v1614 = vld [vmem:[%s5 + $0x18] sm:$0xff]
  %v1615 = vld [vmem:[%s5 + $0x20] sm:$0xff]
  %v1616 = vld [vmem:[%s5 + $0x28] sm:$0xff]
  %v1617 = vld [vmem:[%s5 + $0x30] sm:$0xff]
  %v1618 = vld [vmem:[%s5 + $0x38] sm:$0xff]
  %v1619 = vld [vmem:[%s5 + $0x40] sm:$0xff]
  %v1620 = vld [vmem:[%s5 + $0x48] sm:$0xff]
  %v1621 = vld [vmem:[%s5 + $0x50] sm:$0xff]
  %v1622 = vld [vmem:[%s5 + $0x58] sm:$0xff]
  %v1623 = vld [vmem:[%s5 + $0x60] sm:$0xff]
  %v1624 = vld [vmem:[%s5 + $0x68] sm:$0xff]
  %v1625 = vld [vmem:[%s5 + $0x70] sm:$0xff]
  %v1626 = vld [vmem:[%s5 + $0x78] sm:$0xff]
  %v1627 = vld [vmem:[%s5 + $0x80] sm:$0xff]
  %v1628 = vld [vmem:[%s5 + $0x88] sm:$0xff]
  %v1629 = vld [vmem:[%s5 + $0x90] sm:$0xff]
  %v1630 = vld [vmem:[%s5 + $0x98] sm:$0xff]
  %v1631 = vld [vmem:[%s5 + $0xa0] sm:$0xff]
  %v1632 = vld [vmem:[%s5 + $0xa8] sm:$0xff]
  %v1633 = vld [vmem:[%s5 + $0xb0] sm:$0xff]
  %v1634 = vld [vmem:[%s5 + $0xb8] sm:$0xff]
  %v1635 = vld [vmem:[%s5 + $0xc0] sm:$0xff]
  %v1636 = vld [vmem:[%s5 + $0xc8] sm:$0xff]
  %v1637 = vld [vmem:[%s5 + $0xd0] sm:$0xff]
  %v1638 = vld [vmem:[%s5 + $0xd8] sm:$0xff]
  %v1639 = vld [vmem:[%s5 + $0xe0] sm:$0xff]
  %v1640 = vld [vmem:[%s5 + $0xe8] sm:$0xff]
  %v1641 = vld [vmem:[%s5 + $0xf0] sm:$0xff]
  %v1642 = vld [vmem:[%s5 + $0xf8] sm:$0xff]
  %v1643 = vld [vmem:[%s5 + $0x100] sm:$0xff]
  %v1644 = vld [vmem:[%s5 + $0x108] sm:$0xff]
  %v1645 = vld [vmem:[%s5 + $0x110] sm:$0xff]
  %v1646 = vld [vmem:[%s5 + $0x118] sm:$0xff]
  %v1647 = vld [vmem:[%s5 + $0x120] sm:$0xff]
  %v1648 = vld [vmem:[%s5 + $0x128] sm:$0xff]
  %v1649 = vld [vmem:[%s5 + $0x130] sm:$0xff]
  %v1650 = vld [vmem:[%s5 + $0x138] sm:$0xff]
  %v1651 = vld [vmem:[%s5 + $0x140] sm:$0xff]
  %v1652 = vld [vmem:[%s5 + $0x148] sm:$0xff]
  %v1653 = vld [vmem:[%s5 + $0x150] sm:$0xff]
  %v1654 = vld [vmem:[%s5 + $0x158] sm:$0xff]
  %v1655 = vld [vmem:[%s5 + $0x160] sm:$0xff]
  %v1656 = vld [vmem:[%s5 + $0x168] sm:$0xff]
  %v1657 = vld [vmem:[%s5 + $0x170] sm:$0xff]
  %v1658 = vld [vmem:[%s5 + $0x178] sm:$0xff]
  %v1659 = vld [vmem:[%s5 + $0x180] sm:$0xff]
  %v1660 = vld [vmem:[%s5 + $0x188] sm:$0xff]
  %v1661 = vld [vmem:[%s5 + $0x190] sm:$0xff]
  %v1662 = vld [vmem:[%s5 + $0x198] sm:$0xff]
  %v1663 = vld [vmem:[%s5 + $0x1a0] sm:$0xff]
  %v1664 = vld [vmem:[%s5 + $0x1a8] sm:$0xff]
  %v1665 = vld [vmem:[%s5 + $0x1b0] sm:$0xff]
  %v1666 = vld [vmem:[%s5 + $0x1b8] sm:$0xff]
  %v1667 = vld [vmem:[%s5 + $0x1c0] sm:$0xff]
  %v1668 = vld [vmem:[%s5 + $0x1c8] sm:$0xff]
  %v1669 = vld [vmem:[%s5 + $0x1d0] sm:$0xff]
  %v1670 = vld [vmem:[%s5 + $0x1d8] sm:$0xff]
  %v1671 = vld [vmem:[%s5 + $0x1e0] sm:$0xff]
  %v1672 = vld [vmem:[%s5 + $0x1e8] sm:$0xff]
  %v1673 = vld [vmem:[%s5 + $0x1f0] sm:$0xff]
  %v1674 = vld [vmem:[%s5 + $0x1f8] sm:$0xff]
  %v1675 = vld [vmem:[%s6] sm:$0xf]
  %v1677 = vlaneseq
  %v1678 = vshrl.u32 %v1677, 7
  %v1679 = vsub.s32 0, %v1678
  %v1680 = vrot.slane %v1675, %v1679
  %v1681 = vlaneseq
  %v1682 = vshrl.u32 %v1681, 7
  %v1683 = vsub.s32 1, %v1682
  %v1684 = vrot.slane %v1675, %v1683
  %v1685 = vlaneseq
  %v1686 = vshrl.u32 %v1685, 7
  %v1687 = vsub.s32 2, %v1686
  %v1688 = vrot.slane %v1675, %v1687
  %v1689 = vlaneseq
  %v1690 = vshrl.u32 %v1689, 7
  %v1691 = vsub.s32 3, %v1690
  %v1692 = vrot.slane %v1675, %v1691
  %v1761 = vunpack.c.l.b16 %v1611
  %v1762 = vunpack.c.h.b16 %v1611
  %v1763 = vunpack.c.l.b16 %v1612
  %v1764 = vunpack.c.h.b16 %v1612
  %v1765 = vunpack.c.l.b16 %v1613
  %v1766 = vunpack.c.h.b16 %v1613
  %v1767 = vunpack.c.l.b16 %v1614
  %v1768 = vunpack.c.h.b16 %v1614
  %v1769 = vunpack.c.l.b16 %v1615
  %v1770 = vunpack.c.h.b16 %v1615
  %v1771 = vunpack.c.l.b16 %v1616
  %v1772 = vunpack.c.h.b16 %v1616
  %v1773 = vunpack.c.l.b16 %v1617
  %v1774 = vunpack.c.h.b16 %v1617
  %v1775 = vunpack.c.l.b16 %v1618
  %v1776 = vunpack.c.h.b16 %v1618
  %v1777 = vunpack.c.l.b16 %v1619
  %v1778 = vunpack.c.h.b16 %v1619
  %v1779 = vunpack.c.l.b16 %v1620
  %v1780 = vunpack.c.h.b16 %v1620
  %v1781 = vunpack.c.l.b16 %v1621
  %v1782 = vunpack.c.h.b16 %v1621
  %v1783 = vunpack.c.l.b16 %v1622
  %v1784 = vunpack.c.h.b16 %v1622
  %v1785 = vunpack.c.l.b16 %v1623
  %v1786 = vunpack.c.h.b16 %v1623
  %v1787 = vunpack.c.l.b16 %v1624
  %v1788 = vunpack.c.h.b16 %v1624
  %v1789 = vunpack.c.l.b16 %v1625
  %v1790 = vunpack.c.h.b16 %v1625
  %v1791 = vunpack.c.l.b16 %v1626
  %v1792 = vunpack.c.h.b16 %v1626
  %v1793 = vunpack.c.l.b16 %v1627
  %v1794 = vunpack.c.h.b16 %v1627
  %v1795 = vunpack.c.l.b16 %v1628
  %v1796 = vunpack.c.h.b16 %v1628
  %v1797 = vunpack.c.l.b16 %v1629
  %v1798 = vunpack.c.h.b16 %v1629
  %v1799 = vunpack.c.l.b16 %v1630
  %v1800 = vunpack.c.h.b16 %v1630
  %v1801 = vunpack.c.l.b16 %v1631
  %v1802 = vunpack.c.h.b16 %v1631
  %v1803 = vunpack.c.l.b16 %v1632
  %v1804 = vunpack.c.h.b16 %v1632
  %v1805 = vunpack.c.l.b16 %v1633
  %v1806 = vunpack.c.h.b16 %v1633
  %v1807 = vunpack.c.l.b16 %v1634
  %v1808 = vunpack.c.h.b16 %v1634
  %v1809 = vunpack.c.l.b16 %v1635
  %v1810 = vunpack.c.h.b16 %v1635
  %v1811 = vunpack.c.l.b16 %v1636
  %v1812 = vunpack.c.h.b16 %v1636
  %v1813 = vunpack.c.l.b16 %v1637
  %v1814 = vunpack.c.h.b16 %v1637
  %v1815 = vunpack.c.l.b16 %v1638
  %v1816 = vunpack.c.h.b16 %v1638
  %v1817 = vunpack.c.l.b16 %v1639
  %v1818 = vunpack.c.h.b16 %v1639
  %v1819 = vunpack.c.l.b16 %v1640
  %v1820 = vunpack.c.h.b16 %v1640
  %v1821 = vunpack.c.l.b16 %v1641
  %v1822 = vunpack.c.h.b16 %v1641
  %v1823 = vunpack.c.l.b16 %v1642
  %v1824 = vunpack.c.h.b16 %v1642
  %v1825 = vunpack.c.l.b16 %v1643
  %v1826 = vunpack.c.h.b16 %v1643
  %v1827 = vunpack.c.l.b16 %v1644
  %v1828 = vunpack.c.h.b16 %v1644
  %v1829 = vunpack.c.l.b16 %v1645
  %v1830 = vunpack.c.h.b16 %v1645
  %v1831 = vunpack.c.l.b16 %v1646
  %v1832 = vunpack.c.h.b16 %v1646
  %v1833 = vunpack.c.l.b16 %v1647
  %v1834 = vunpack.c.h.b16 %v1647
  %v1835 = vunpack.c.l.b16 %v1648
  %v1836 = vunpack.c.h.b16 %v1648
  %v1837 = vunpack.c.l.b16 %v1649
  %v1838 = vunpack.c.h.b16 %v1649
  %v1839 = vunpack.c.l.b16 %v1650
  %v1840 = vunpack.c.h.b16 %v1650
  %v1841 = vunpack.c.l.b16 %v1651
  %v1842 = vunpack.c.h.b16 %v1651
  %v1843 = vunpack.c.l.b16 %v1652
  %v1844 = vunpack.c.h.b16 %v1652
  %v1845 = vunpack.c.l.b16 %v1653
  %v1846 = vunpack.c.h.b16 %v1653
  %v1847 = vunpack.c.l.b16 %v1654
  %v1848 = vunpack.c.h.b16 %v1654
  %v1849 = vunpack.c.l.b16 %v1655
  %v1850 = vunpack.c.h.b16 %v1655
  %v1851 = vunpack.c.l.b16 %v1656
  %v1852 = vunpack.c.h.b16 %v1656
  %v1853 = vunpack.c.l.b16 %v1657
  %v1854 = vunpack.c.h.b16 %v1657
  %v1855 = vunpack.c.l.b16 %v1658
  %v1856 = vunpack.c.h.b16 %v1658
  %v1857 = vunpack.c.l.b16 %v1659
  %v1858 = vunpack.c.h.b16 %v1659
  %v1859 = vunpack.c.l.b16 %v1660
  %v1860 = vunpack.c.h.b16 %v1660
  %v1861 = vunpack.c.l.b16 %v1661
  %v1862 = vunpack.c.h.b16 %v1661
  %v1863 = vunpack.c.l.b16 %v1662
  %v1864 = vunpack.c.h.b16 %v1662
  %v1865 = vunpack.c.l.b16 %v1663
  %v1866 = vunpack.c.h.b16 %v1663
  %v1867 = vunpack.c.l.b16 %v1664
  %v1868 = vunpack.c.h.b16 %v1664
  %v1869 = vunpack.c.l.b16 %v1665
  %v1870 = vunpack.c.h.b16 %v1665
  %v1871 = vunpack.c.l.b16 %v1666
  %v1872 = vunpack.c.h.b16 %v1666
  %v1873 = vunpack.c.l.b16 %v1667
  %v1874 = vunpack.c.h.b16 %v1667
  %v1875 = vunpack.c.l.b16 %v1668
  %v1876 = vunpack.c.h.b16 %v1668
  %v1877 = vunpack.c.l.b16 %v1669
  %v1878 = vunpack.c.h.b16 %v1669
  %v1879 = vunpack.c.l.b16 %v1670
  %v1880 = vunpack.c.h.b16 %v1670
  %v1881 = vunpack.c.l.b16 %v1671
  %v1882 = vunpack.c.h.b16 %v1671
  %v1883 = vunpack.c.l.b16 %v1672
  %v1884 = vunpack.c.h.b16 %v1672
  %v1885 = vunpack.c.l.b16 %v1673
  %v1886 = vunpack.c.h.b16 %v1673
  %v1887 = vunpack.c.l.b16 %v1674
  %v1888 = vunpack.c.h.b16 %v1674
  %v1889 = vpack.c.b16 %v1765, %v1761
  %v1890 = vpack.c.b16 %v1766, %v1762
  %v1891 = vpack.c.b16 %v1767, %v1763
  %v1892 = vpack.c.b16 %v1768, %v1764
  %v1893 = vpack.c.b16 %v1773, %v1769
  %v1894 = vpack.c.b16 %v1774, %v1770
  %v1895 = vpack.c.b16 %v1775, %v1771
  %v1896 = vpack.c.b16 %v1776, %v1772
  %v1897 = vpack.c.b16 %v1781, %v1777
  %v1898 = vpack.c.b16 %v1782, %v1778
  %v1899 = vpack.c.b16 %v1783, %v1779
  %v1900 = vpack.c.b16 %v1784, %v1780
  %v1901 = vpack.c.b16 %v1789, %v1785
  %v1902 = vpack.c.b16 %v1790, %v1786
  %v1903 = vpack.c.b16 %v1791, %v1787
  %v1904 = vpack.c.b16 %v1792, %v1788
  %v1905 = vpack.c.b16 %v1797, %v1793
  %v1906 = vpack.c.b16 %v1798, %v1794
  %v1907 = vpack.c.b16 %v1799, %v1795
  %v1908 = vpack.c.b16 %v1800, %v1796
  %v1909 = vpack.c.b16 %v1805, %v1801
  %v1910 = vpack.c.b16 %v1806, %v1802
  %v1911 = vpack.c.b16 %v1807, %v1803
  %v1912 = vpack.c.b16 %v1808, %v1804
  %v1913 = vpack.c.b16 %v1813, %v1809
  %v1914 = vpack.c.b16 %v1814, %v1810
  %v1915 = vpack.c.b16 %v1815, %v1811
  %v1916 = vpack.c.b16 %v1816, %v1812
  %v1917 = vpack.c.b16 %v1821, %v1817
  %v1918 = vpack.c.b16 %v1822, %v1818
  %v1919 = vpack.c.b16 %v1823, %v1819
  %v1920 = vpack.c.b16 %v1824, %v1820
  %v1921 = vpack.c.b16 %v1829, %v1825
  %v1922 = vpack.c.b16 %v1830, %v1826
  %v1923 = vpack.c.b16 %v1831, %v1827
  %v1924 = vpack.c.b16 %v1832, %v1828
  %v1925 = vpack.c.b16 %v1837, %v1833
  %v1926 = vpack.c.b16 %v1838, %v1834
  %v1927 = vpack.c.b16 %v1839, %v1835
  %v1928 = vpack.c.b16 %v1840, %v1836
  %v1929 = vpack.c.b16 %v1845, %v1841
  %v1930 = vpack.c.b16 %v1846, %v1842
  %v1931 = vpack.c.b16 %v1847, %v1843
  %v1932 = vpack.c.b16 %v1848, %v1844
  %v1933 = vpack.c.b16 %v1853, %v1849
  %v1934 = vpack.c.b16 %v1854, %v1850
  %v1935 = vpack.c.b16 %v1855, %v1851
  %v1936 = vpack.c.b16 %v1856, %v1852
  %v1937 = vpack.c.b16 %v1861, %v1857
  %v1938 = vpack.c.b16 %v1862, %v1858
  %v1939 = vpack.c.b16 %v1863, %v1859
  %v1940 = vpack.c.b16 %v1864, %v1860
  %v1941 = vpack.c.b16 %v1869, %v1865
  %v1942 = vpack.c.b16 %v1870, %v1866
  %v1943 = vpack.c.b16 %v1871, %v1867
  %v1944 = vpack.c.b16 %v1872, %v1868
  %v1945 = vpack.c.b16 %v1877, %v1873
  %v1946 = vpack.c.b16 %v1878, %v1874
  %v1947 = vpack.c.b16 %v1879, %v1875
  %v1948 = vpack.c.b16 %v1880, %v1876
  %v1949 = vpack.c.b16 %v1885, %v1881
  %v1950 = vpack.c.b16 %v1886, %v1882
  %v1951 = vpack.c.b16 %v1887, %v1883
  %v1952 = vpack.c.b16 %v1888, %v1884
  %2017 = vmatprep.subr.bf16.mxu0 %v1890
  %2018 = vmatpush1.bf16.msra.mxu0 %v1889
  %2019 = vmatprep.subr.bf16.mxu0 %v1894
  %2020 = vmatpush1.bf16.msra.mxu0 %v1893
  %2021 = vmatprep.subr.bf16.mxu0 %v1898
  %2022 = vmatpush1.bf16.msra.mxu0 %v1897
  %2023 = vmatprep.subr.bf16.mxu0 %v1902
  %2024 = vmatpush1.bf16.msra.mxu0 %v1901
  %2025 = vmatprep.subr.bf16.mxu0 %v1906
  %2026 = vmatpush1.bf16.msra.mxu0 %v1905
  %2027 = vmatprep.subr.bf16.mxu0 %v1910
  %2028 = vmatpush1.bf16.msra.mxu0 %v1909
  %2029 = vmatprep.subr.bf16.mxu0 %v1914
  %2030 = vmatpush1.bf16.msra.mxu0 %v1913
  %2031 = vmatprep.subr.bf16.mxu0 %v1918
  %2032 = vmatpush1.bf16.msra.mxu0 %v1917
  %2033 = vmatprep.subr.bf16.mxu0 %v1922
  %2034 = vmatpush1.bf16.msra.mxu0 %v1921
  %2035 = vmatprep.subr.bf16.mxu0 %v1926
  %2036 = vmatpush1.bf16.msra.mxu0 %v1925
  %2037 = vmatprep.subr.bf16.mxu0 %v1930
  %2038 = vmatpush1.bf16.msra.mxu0 %v1929
  %2039 = vmatprep.subr.bf16.mxu0 %v1934
  %2040 = vmatpush1.bf16.msra.mxu0 %v1933
  %2041 = vmatprep.subr.bf16.mxu0 %v1938
  %2042 = vmatpush1.bf16.msra.mxu0 %v1937
  %2043 = vmatprep.subr.bf16.mxu0 %v1942
  %2044 = vmatpush1.bf16.msra.mxu0 %v1941
  %2045 = vmatprep.subr.bf16.mxu0 %v1946
  %2046 = vmatpush1.bf16.msra.mxu0 %v1945
  %2047 = vmatprep.subr.bf16.mxu0 %v1950
  %2048 = vmatpush1.bf16.msra.mxu0 %v1949
  %2049 = vmatprep.mubr.bf16.mxu0 %v1610
  %2050 = vmatmul.mubr.bf16.gmra.mrb[0].mxu0 %v1609
  %v2051 = vpop.f32.mrb[0].mxu0
  %v2052 = vadd.f32 %v1680, %v2051
  %v2053 = vpop.f32.mrb[0].mxu0
  %v2054 = vadd.f32 %v1684, %v2053
  %v2055 = vpop.f32.mrb[0].mxu0
  %v2056 = vpop.f32.mrb[0].mxu0
  %2057 = vdwg.mxu0
  %2058 = vmatprep.subr.bf16.mxu0 %v1892
  %2059 = vmatpush1.bf16.msra.mxu0 %v1891
  %2060 = vmatprep.subr.bf16.mxu0 %v1896
  %2061 = vmatpush1.bf16.msra.mxu0 %v1895
  %2062 = vmatprep.subr.bf16.mxu0 %v1900
  %2063 = vmatpush1.bf16.msra.mxu0 %v1899
  %2064 = vmatprep.subr.bf16.mxu0 %v1904
  %2065 = vmatpush1.bf16.msra.mxu0 %v1903
  %2066 = vmatprep.subr.bf16.mxu0 %v1908
  %2067 = vmatpush1.bf16.msra.mxu0 %v1907
  %2068 = vmatprep.subr.bf16.mxu0 %v1912
  %2069 = vmatpush1.bf16.msra.mxu0 %v1911
  %2070 = vmatprep.subr.bf16.mxu0 %v1916
  %2071 = vmatpush1.bf16.msra.mxu0 %v1915
  %2072 = vmatprep.subr.bf16.mxu0 %v1920
  %2073 = vmatpush1.bf16.msra.mxu0 %v1919
  %2074 = vmatprep.subr.bf16.mxu0 %v1924
  %2075 = vmatpush1.bf16.msra.mxu0 %v1923
  %2076 = vmatprep.subr.bf16.mxu0 %v1928
  %2077 = vmatpush1.bf16.msra.mxu0 %v1927
  %2078 = vmatprep.subr.bf16.mxu0 %v1932
  %2079 = vmatpush1.bf16.msra.mxu0 %v1931
  %2080 = vmatprep.subr.bf16.mxu0 %v1936
  %2081 = vmatpush1.bf16.msra.mxu0 %v1935
  %2082 = vmatprep.subr.bf16.mxu0 %v1940
  %2083 = vmatpush1.bf16.msra.mxu0 %v1939
  %2084 = vmatprep.subr.bf16.mxu0 %v1944
  %2085 = vmatpush1.bf16.msra.mxu0 %v1943
  %2086 = vmatprep.subr.bf16.mxu0 %v1948
  %2087 = vmatpush1.bf16.msra.mxu0 %v1947
  %2088 = vmatprep.subr.bf16.mxu0 %v1952
  %2089 = vmatpush1.bf16.msra.mxu0 %v1951
  %2090 = vmatprep.mubr.bf16.mxu0 %v1610
  %2091 = vmatmul.mubr.bf16.gmra.mrb[0].mxu0 %v1609
  %v2092 = vpop.f32.mrb[0].mxu0
  %v2093 = vadd.f32 %v1688, %v2092
  %v2094 = vpop.f32.mrb[0].mxu0
  %v2095 = vadd.f32 %v1692, %v2094
  %v2096 = vpop.f32.mrb[0].mxu0
  %v2097 = vpop.f32.mrb[0].mxu0
  %2098 = vdwg.mxu0
  %v2099 = vmax.f32 %v2052, 0.0
  %v2100 = vmax.f32 %v2054, 0.0
  %v2101 = vmax.f32 %v2093, 0.0
  %v2102 = vmax.f32 %v2095, 0.0
  %v2103 = vmax.f32 %v2099, %v2101
  %v2104 = vmax.f32 %v2100, %v2102
  %v2105 = vpack.c.bf16 %v2103, %v2103
  %v2106 = vpack.c.bf16 %v2104, %v2104
  %v2107 = vld [vmem:[%s7] sm:$0xf]
  %v2108 = vld [vmem:[%s7 + $0x4] sm:$0xf]
  %v2109 = vld [vmem:[%s7 + $0x8] sm:$0xf]
  %v2110 = vld [vmem:[%s7 + $0xc] sm:$0xf]
  %v2111 = vld [vmem:[%s7 + $0x10] sm:$0xf]
  %v2112 = vld [vmem:[%s7 + $0x14] sm:$0xf]
  %v2113 = vld [vmem:[%s7 + $0x18] sm:$0xf]
  %v2114 = vld [vmem:[%s7 + $0x1c] sm:$0xf]
  %v2115 = vld [vmem:[%s7 + $0x20] sm:$0xf]
  %v2116 = vld [vmem:[%s7 + $0x24] sm:$0xf]
  %v2117 = vld [vmem:[%s7 + $0x28] sm:$0xf]
  %v2118 = vld [vmem:[%s7 + $0x2c] sm:$0xf]
  %v2119 = vld [vmem:[%s7 + $0x30] sm:$0xf]
  %v2120 = vld [vmem:[%s7 + $0x34] sm:$0xf]
  %v2121 = vld [vmem:[%s7 + $0x38] sm:$0xf]
  %v2122 = vld [vmem:[%s7 + $0x3c] sm:$0xf]
  %v2123 = vld [vmem:[%s7 + $0x40] sm:$0xf]
  %v2124 = vld [vmem:[%s7 + $0x44] sm:$0xf]
  %v2125 = vld [vmem:[%s7 + $0x48] sm:$0xf]
  %v2126 = vld [vmem:[%s7 + $0x4c] sm:$0xf]
  %v2127 = vld [vmem:[%s7 + $0x50] sm:$0xf]
  %v2128 = vld [vmem:[%s7 + $0x54] sm:$0xf]
  %v2129 = vld [vmem:[%s7 + $0x58] sm:$0xf]
  %v2130 = vld [vmem:[%s7 + $0x5c] sm:$0xf]
  %v2131 = vld [vmem:[%s7 + $0x60] sm:$0xf]
  %v2132 = vld [vmem:[%s7 + $0x64] sm:$0xf]
  %v2133 = vld [vmem:[%s7 + $0x68] sm:$0xf]
  %v2134 = vld [vmem:[%s7 + $0x6c] sm:$0xf]
  %v2135 = vld [vmem:[%s7 + $0x70] sm:$0xf]
  %v2136 = vld [vmem:[%s7 + $0x74] sm:$0xf]
  %v2137 = vld [vmem:[%s7 + $0x78] sm:$0xf]
  %v2138 = vld [vmem:[%s7 + $0x7c] sm:$0xf]
  %v2139 = vld [vmem:[%s8] sm:$0x1]
  %v2141 = vlaneseq
  %v2142 = vshrl.u32 %v2141, 7
  %v2143 = vsub.s32 0, %v2142
  %v2144 = vrot.slane %v2139, %v2143
  %v2178 = vunpack.c.l.b16 %v2107
  %v2179 = vunpack.c.l.b16 %v2108
  %v2180 = vunpack.c.l.b16 %v2109
  %v2181 = vunpack.c.l.b16 %v2110
  %v2182 = vunpack.c.l.b16 %v2111
  %v2183 = vunpack.c.l.b16 %v2112
  %v2184 = vunpack.c.l.b16 %v2113
  %v2185 = vunpack.c.l.b16 %v2114
  %v2186 = vunpack.c.l.b16 %v2115
  %v2187 = vunpack.c.l.b16 %v2116
  %v2188 = vunpack.c.l.b16 %v2117
  %v2189 = vunpack.c.l.b16 %v2118
  %v2190 = vunpack.c.l.b16 %v2119
  %v2191 = vunpack.c.l.b16 %v2120
  %v2192 = vunpack.c.l.b16 %v2121
  %v2193 = vunpack.c.l.b16 %v2122
  %v2194 = vunpack.c.l.b16 %v2123
  %v2195 = vunpack.c.l.b16 %v2124
  %v2196 = vunpack.c.l.b16 %v2125
  %v2197 = vunpack.c.l.b16 %v2126
  %v2198 = vunpack.c.l.b16 %v2127
  %v2199 = vunpack.c.l.b16 %v2128
  %v2200 = vunpack.c.l.b16 %v2129
  %v2201 = vunpack.c.l.b16 %v2130
  %v2202 = vunpack.c.l.b16 %v2131
  %v2203 = vunpack.c.l.b16 %v2132
  %v2204 = vunpack.c.l.b16 %v2133
  %v2205 = vunpack.c.l.b16 %v2134
  %v2206 = vunpack.c.l.b16 %v2135
  %v2207 = vunpack.c.l.b16 %v2136
  %v2208 = vunpack.c.l.b16 %v2137
  %v2209 = vunpack.c.l.b16 %v2138
  %v2210 = vpack.c.b16 %v2179, %v2178
  %v2211 = vpack.c.b16 %v2181, %v2180
  %v2212 = vpack.c.b16 %v2183, %v2182
  %v2213 = vpack.c.b16 %v2185, %v2184
  %v2214 = vpack.c.b16 %v2187, %v2186
  %v2215 = vpack.c.b16 %v2189, %v2188
  %v2216 = vpack.c.b16 %v2191, %v2190
  %v2217 = vpack.c.b16 %v2193, %v2192
  %v2218 = vpack.c.b16 %v2195, %v2194
  %v2219 = vpack.c.b16 %v2197, %v2196
  %v2220 = vpack.c.b16 %v2199, %v2198
  %v2221 = vpack.c.b16 %v2201, %v2200
  %v2222 = vpack.c.b16 %v2203, %v2202
  %v2223 = vpack.c.b16 %v2205, %v2204
  %v2224 = vpack.c.b16 %v2207, %v2206
  %v2225 = vpack.c.b16 %v2209, %v2208
  %2242 = vmatprep.subr.bf16.mxu0 0
  %2243 = vmatpush1.bf16.msra.mxu0 %v2210
  %2244 = vmatprep.subr.bf16.mxu0 0
  %2245 = vmatpush1.bf16.msra.mxu0 %v2211
  %2246 = vmatprep.subr.bf16.mxu0 0
  %2247 = vmatpush1.bf16.msra.mxu0 %v2212
  %2248 = vmatprep.subr.bf16.mxu0 0
  %2249 = vmatpush1.bf16.msra.mxu0 %v2213
  %2250 = vmatprep.subr.bf16.mxu0 0
  %2251 = vmatpush1.bf16.msra.mxu0 %v2214
  %2252 = vmatprep.subr.bf16.mxu0 0
  %2253 = vmatpush1.bf16.msra.mxu0 %v2215
  %2254 = vmatprep.subr.bf16.mxu0 0
  %2255 = vmatpush1.bf16.msra.mxu0 %v2216
  %2256 = vmatprep.subr.bf16.mxu0 0
  %2257 = vmatpush1.bf16.msra.mxu0 %v2217
  %2258 = vmatprep.subr.bf16.mxu0 0
  %2259 = vmatpush1.bf16.msra.mxu0 %v2218
  %2260 = vmatprep.subr.bf16.mxu0 0
  %2261 = vmatpush1.bf16.msra.mxu0 %v2219
  %2262 = vmatprep.subr.bf16.mxu0 0
  %2263 = vmatpush1.bf16.msra.mxu0 %v2220
  %2264 = vmatprep.subr.bf16.mxu0 0
  %2265 = vmatpush1.bf16.msra.mxu0 %v2221
  %2266 = vmatprep.subr.bf16.mxu0 0
  %2267 = vmatpush1.bf16.msra.mxu0 %v2222
  %2268 = vmatprep.subr.bf16.mxu0 0
  %2269 = vmatpush1.bf16.msra.mxu0 %v2223
  %2270 = vmatprep.subr.bf16.mxu0 0
  %2271 = vmatpush1.bf16.msra.mxu0 %v2224
  %2272 = vmatprep.subr.bf16.mxu0 0
  %2273 = vmatpush1.bf16.msra.mxu0 %v2225
  %2274 = vmatprep.mubr.bf16.mxu0 %v2106
  %2275 = vmatmul.mubr.bf16.gmra.mrb[0].mxu0 %v2105
  %v2276 = vpop.f32.mrb[0].mxu0
  %v2277 = vadd.f32 %v2144, %v2276
  %v2278 = vpop.f32.mrb[0].mxu0
  %v2279 = vpop.f32.mrb[0].mxu0
  %v2280 = vpop.f32.mrb[0].mxu0
  %2281 = vdwg.mxu0
  %2282 = vst [vmem:[%s11] sm:$0xff] %v2277
  %v2283 = vld [vmem:[%s9] sm:$0xf]
  %v2284 = vld [vmem:[%s9 + $0x4] sm:$0xf]
  %v2285 = vld [vmem:[%s9 + $0x8] sm:$0xf]
  %v2286 = vld [vmem:[%s9 + $0xc] sm:$0xf]
  %v2287 = vld [vmem:[%s9 + $0x10] sm:$0xf]
  %v2288 = vld [vmem:[%s9 + $0x14] sm:$0xf]
  %v2289 = vld [vmem:[%s9 + $0x18] sm:$0xf]
  %v2290 = vld [vmem:[%s9 + $0x1c] sm:$0xf]
  %v2291 = vld [vmem:[%s9 + $0x20] sm:$0xf]
  %v2292 = vld [vmem:[%s9 + $0x24] sm:$0xf]
  %v2293 = vld [vmem:[%s9 + $0x28] sm:$0xf]
  %v2294 = vld [vmem:[%s9 + $0x2c] sm:$0xf]
  %v2295 = vld [vmem:[%s9 + $0x30] sm:$0xf]
  %v2296 = vld [vmem:[%s9 + $0x34] sm:$0xf]
  %v2297 = vld [vmem:[%s9 + $0x38] sm:$0xf]
  %v2298 = vld [vmem:[%s9 + $0x3c] sm:$0xf]
  %v2299 = vld [vmem:[%s9 + $0x40] sm:$0xf]
  %v2300 = vld [vmem:[%s9 + $0x44] sm:$0xf]
  %v2301 = vld [vmem:[%s9 + $0x48] sm:$0xf]
  %v2302 = vld [vmem:[%s9 + $0x4c] sm:$0xf]
  %v2303 = vld [vmem:[%s9 + $0x50] sm:$0xf]
  %v2304 = vld [vmem:[%s9 + $0x54] sm:$0xf]
  %v2305 = vld [vmem:[%s9 + $0x58] sm:$0xf]
  %v2306 = vld [vmem:[%s9 + $0x5c] sm:$0xf]
  %v2307 = vld [vmem:[%s9 + $0x60] sm:$0xf]
  %v2308 = vld [vmem:[%s9 + $0x64] sm:$0xf]
  %v2309 = vld [vmem:[%s9 + $0x68] sm:$0xf]
  %v2310 = vld [vmem:[%s9 + $0x6c] sm:$0xf]
  %v2311 = vld [vmem:[%s9 + $0x70] sm:$0xf]
  %v2312 = vld [vmem:[%s9 + $0x74] sm:$0xf]
  %v2313 = vld [vmem:[%s9 + $0x78] sm:$0xf]
  %v2314 = vld [vmem:[%s9 + $0x7c] sm:$0xf]
  %v2315 = vld [vmem:[%s10] sm:$0x1]
  %v2317 = vlaneseq
  %v2318 = vshrl.u32 %v2317, 7
  %v2319 = vsub.s32 0, %v2318
  %v2320 = vrot.slane %v2315, %v2319
  %v2354 = vunpack.c.l.b16 %v2283
  %v2355 = vunpack.c.l.b16 %v2284
  %v2356 = vunpack.c.l.b16 %v2285
  %v2357 = vunpack.c.l.b16 %v2286
  %v2358 = vunpack.c.l.b16 %v2287
  %v2359 = vunpack.c.l.b16 %v2288
  %v2360 = vunpack.c.l.b16 %v2289
  %v2361 = vunpack.c.l.b16 %v2290
  %v2362 = vunpack.c.l.b16 %v2291
  %v2363 = vunpack.c.l.b16 %v2292
  %v2364 = vunpack.c.l.b16 %v2293
  %v2365 = vunpack.c.l.b16 %v2294
  %v2366 = vunpack.c.l.b16 %v2295
  %v2367 = vunpack.c.l.b16 %v2296
  %v2368 = vunpack.c.l.b16 %v2297
  %v2369 = vunpack.c.l.b16 %v2298
  %v2370 = vunpack.c.l.b16 %v2299
  %v2371 = vunpack.c.l.b16 %v2300
  %v2372 = vunpack.c.l.b16 %v2301
  %v2373 = vunpack.c.l.b16 %v2302
  %v2374 = vunpack.c.l.b16 %v2303
  %v2375 = vunpack.c.l.b16 %v2304
  %v2376 = vunpack.c.l.b16 %v2305
  %v2377 = vunpack.c.l.b16 %v2306
  %v2378 = vunpack.c.l.b16 %v2307
  %v2379 = vunpack.c.l.b16 %v2308
  %v2380 = vunpack.c.l.b16 %v2309
  %v2381 = vunpack.c.l.b16 %v2310
  %v2382 = vunpack.c.l.b16 %v2311
  %v2383 = vunpack.c.l.b16 %v2312
  %v2384 = vunpack.c.l.b16 %v2313
  %v2385 = vunpack.c.l.b16 %v2314
  %v2386 = vpack.c.b16 %v2355, %v2354
  %v2387 = vpack.c.b16 %v2357, %v2356
  %v2388 = vpack.c.b16 %v2359, %v2358
  %v2389 = vpack.c.b16 %v2361, %v2360
  %v2390 = vpack.c.b16 %v2363, %v2362
  %v2391 = vpack.c.b16 %v2365, %v2364
  %v2392 = vpack.c.b16 %v2367, %v2366
  %v2393 = vpack.c.b16 %v2369, %v2368
  %v2394 = vpack.c.b16 %v2371, %v2370
  %v2395 = vpack.c.b16 %v2373, %v2372
  %v2396 = vpack.c.b16 %v2375, %v2374
  %v2397 = vpack.c.b16 %v2377, %v2376
  %v2398 = vpack.c.b16 %v2379, %v2378
  %v2399 = vpack.c.b16 %v2381, %v2380
  %v2400 = vpack.c.b16 %v2383, %v2382
  %v2401 = vpack.c.b16 %v2385, %v2384
  %2418 = vmatprep.subr.bf16.mxu0 0
  %2419 = vmatpush1.bf16.msra.mxu0 %v2386
  %2420 = vmatprep.subr.bf16.mxu0 0
  %2421 = vmatpush1.bf16.msra.mxu0 %v2387
  %2422 = vmatprep.subr.bf16.mxu0 0
  %2423 = vmatpush1.bf16.msra.mxu0 %v2388
  %2424 = vmatprep.subr.bf16.mxu0 0
  %2425 = vmatpush1.bf16.msra.mxu0 %v2389
  %2426 = vmatprep.subr.bf16.mxu0 0
  %2427 = vmatpush1.bf16.msra.mxu0 %v2390
  %2428 = vmatprep.subr.bf16.mxu0 0
  %2429 = vmatpush1.bf16.msra.mxu0 %v2391
  %2430 = vmatprep.subr.bf16.mxu0 0
  %2431 = vmatpush1.bf16.msra.mxu0 %v2392
  %2432 = vmatprep.subr.bf16.mxu0 0
  %2433 = vmatpush1.bf16.msra.mxu0 %v2393
  %2434 = vmatprep.subr.bf16.mxu0 0
  %2435 = vmatpush1.bf16.msra.mxu0 %v2394
  %2436 = vmatprep.subr.bf16.mxu0 0
  %2437 = vmatpush1.bf16.msra.mxu0 %v2395
  %2438 = vmatprep.subr.bf16.mxu0 0
  %2439 = vmatpush1.bf16.msra.mxu0 %v2396
  %2440 = vmatprep.subr.bf16.mxu0 0
  %2441 = vmatpush1.bf16.msra.mxu0 %v2397
  %2442 = vmatprep.subr.bf16.mxu0 0
  %2443 = vmatpush1.bf16.msra.mxu0 %v2398
  %2444 = vmatprep.subr.bf16.mxu0 0
  %2445 = vmatpush1.bf16.msra.mxu0 %v2399
  %2446 = vmatprep.subr.bf16.mxu0 0
  %2447 = vmatpush1.bf16.msra.mxu0 %v2400
  %2448 = vmatprep.subr.bf16.mxu0 0
  %2449 = vmatpush1.bf16.msra.mxu0 %v2401
  %2450 = vmatprep.mubr.bf16.mxu0 %v2106
  %2451 = vmatmul.mubr.bf16.gmra.mrb[0].mxu0 %v2105
  %v2452 = vpop.f32.mrb[0].mxu0
  %v2453 = vadd.f32 %v2320, %v2452
  %v2454 = vpop.f32.mrb[0].mxu0
  %v2455 = vpop.f32.mrb[0].mxu0
  %v2456 = vpop.f32.mrb[0].mxu0
  %2457 = vdwg.mxu0
  %2458 = vst [vmem:[%s12] sm:$0xff] %v2453
  // Predicated region
  $region46: #{cnn1d_forward.1} parent=0 // pred_check
    _
  $region47: #{cnn1d_forward.1} parent=0 // pred_check_branch
    %2460 = sbr.rel (0) target = $region49
  $region48: #{cnn1d_forward.1} parent=0 // pred_region
    _
  $region49: #{cnn1d_forward.1} parent=0 // pred_fallthru
    _
  // Predicated region
  $region50: #{cnn1d_forward.1} parent=0 // pred_check
    _
  $region51: #{cnn1d_forward.1} parent=0 // pred_check_branch
    %2462 = sbr.rel (0) target = $region53
  $region52: #{cnn1d_forward.1} parent=0 // pred_region
    _
  $region53: #{cnn1d_forward.1} parent=0 // pred_fallthru
    _
  // Predicated region
  $region54: #{cnn1d_forward.1} parent=0 // pred_check
    _
  $region55: #{cnn1d_forward.1} parent=0 // pred_check_branch
    %2464 = sbr.rel (0) target = $region57
  $region56: #{cnn1d_forward.1} parent=0 // pred_region
    _
  $region57: #{cnn1d_forward.1} parent=0 // pred_fallthru
    _
  // Predicated region
  $region58: #{cnn1d_forward.1} parent=0 // pred_check
    _
  $region59: #{cnn1d_forward.1} parent=0 // pred_check_branch
    %2466 = sbr.rel (0) target = $region61
  $region60: #{cnn1d_forward.1} parent=0 // pred_region
    _
  $region61: #{cnn1d_forward.1} parent=0 // pred_fallthru
    _

</llo_original>
